<compile_context>
chip_gen: v7x
topology: tpu7x:2x2x1
jax: 0.10.0
libtpu: 0.0.40
codegen_flags: <defaults>
</compile_context>

<pallas_src>
import functools

import jax
import jax.numpy as jnp
from jax import lax
from jax.experimental import pallas as pl
from jax.experimental.pallas import tpu as pltpu

K = 3        # kernel_size (module default)
STRIDE = 1   # stride (module default; kernel below assumes stride == 1)
PAD = 1      # padding (module default)
EPS = 1e-5   # BatchNorm2d default eps


def conv_stats_kernel(x_ref, w_ref, conv_ref, stats_ref, patch_ref):
    """Phase 1: conv for one batch slice + per-channel sum / sum-of-squares.

    x_ref:     (1, Hp, Wp, Cin)    padded NHWC input slice
    w_ref:     (K*K*Cin, Cout)     weight, im2col (ky, kx, ci)-major
    conv_ref:  (1, Cout, H*W)      conv output, channel-major (lane-dense: H*W % 128 == 0)
    stats_ref: (1, 2, Cout)        [sum, sum_of_squares] over this batch slice
    patch_ref: (H, W, K*K*Cin)     VMEM im2col scratch
    """
    _, Hp, Wp, Cin = x_ref.shape
    H = Hp - (K - 1)
    W = Wp - (K - 1)

    # Manual im2col into VMEM scratch: 9 static-offset copies, then ONE matmul with a
    # K*K*Cin-deep contraction (instead of 9 depth-Cin matmuls + 9 accumulate passes).
    for ky in range(K):
        for kx in range(K):
            t = ky * K + kx
            patch_ref[:, :, t * Cin:(t + 1) * Cin] = x_ref[0, ky:ky + H, kx:kx + W, :]

    patch = patch_ref[...].reshape(H * W, K * K * Cin)       # minor dim unchanged -> cheap
    acc = jnp.dot(patch, w_ref[...],
                  preferred_element_type=jnp.float32)         # (H*W, Cout), MXU, f32 acc

    # NOTE: Conv2d bias is intentionally omitted — a per-channel constant is cancelled by the
    # mean subtraction of train-mode BatchNorm, so adding it is wasted work.

    # One-pass BN statistics (partial, this batch slice): sum and sum of squares.
    stats_ref[0, 0:1, :] = jnp.sum(acc, axis=0, keepdims=True)
    stats_ref[0, 1:2, :] = jnp.sum(acc * acc, axis=0, keepdims=True)

    # Single transpose so the HBM store (and everything downstream) is lane-dense.
    conv_ref[0] = jnp.transpose(acc)                          # (Cout, H*W)


def bn_apply_kernel(conv_ref, scale_ref, shift_ref, o_ref):
    """Phase 2: y = conv * scale[c] + shift[c] (mem-bound, lane-dense loads/stores).

    conv_ref: (1, Cout, H*W); scale_ref/shift_ref: (Cout, 1); o_ref: (1, Cout, H*W)
    """
    o_ref[0] = conv_ref[0] * scale_ref[...] + shift_ref[...]


@functools.partial(jax.jit, static_argnames=())
def conv_bn(x_nchw, weight, bias, gamma, beta):
    """x_nchw: (N, Cin, H, W); weight: (Cout, Cin, K, K) (PyTorch Conv2d layout).

    Returns BatchNorm2d(Conv2d(x)) using batch statistics (training-mode forward), NCHW.
    `bias` is accepted for API parity but unused (cancels under train-mode BN).
    """
    del bias
    N, Cin, H, W = x_nchw.shape
    Cout = weight.shape[0]
    HW = H * W
    KKC = K * K * Cin
    Hp, Wp = H + 2 * PAD, W + 2 * PAD

    # --- layout glue, done once outside the kernels ---
    x = jnp.transpose(x_nchw, (0, 2, 3, 1))                              # NCHW -> NHWC
    x_pad = jnp.pad(x, ((0, 0), (PAD, PAD), (PAD, PAD), (0, 0)))         # (N, Hp, Wp, Cin)
    # (Cout, Cin, K, K) -> (K, K, Cin, Cout) -> (K*K*Cin, Cout): row index = (ky*K+kx)*Cin + ci
    w_mat = jnp.transpose(weight, (2, 3, 1, 0)).reshape(KKC, Cout)

    cparams = pltpu.CompilerParams(
        dimension_semantics=("parallel",),       # independent batch tiles -> both TCs on v7x
        vmem_limit_bytes=32 * 1024 * 1024,       # above v5e's 16 MiB default; tiles are tiny
    )

    # ---- Phase 1: conv + partial BN stats (tiled & pipelined over batch) ----
    conv_t, stats = pl.pallas_call(
        conv_stats_kernel,
        grid=(N,),
        in_specs=[
            pl.BlockSpec((1, Hp, Wp, Cin), lambda n: (n, 0, 0, 0)),
            pl.BlockSpec((KKC, Cout), lambda n: (0, 0)),
        ],
        out_specs=[
            pl.BlockSpec((1, Cout, HW), lambda n: (n, 0, 0)),
            pl.BlockSpec((1, 2, Cout), lambda n: (n, 0, 0)),
        ],
        out_shape=[
            jax.ShapeDtypeStruct((N, Cout, HW), jnp.float32),
            jax.ShapeDtypeStruct((N, 2, Cout), jnp.float32),
        ],
        scratch_shapes=[pltpu.VMEM((H, W, KKC), jnp.float32)],
        compiler_params=cparams,
    )(x_pad, w_mat)

    # ---- Tiny per-channel reduction (Cout-sized vectors; negligible) ----
    cnt = jnp.float32(N * H * W)
    tot = jnp.sum(stats, axis=0)                       # (2, Cout)
    mean = tot[0] / cnt
    var = tot[1] / cnt - mean * mean                   # biased variance (train-mode BN)
    inv = lax.rsqrt(var + EPS)
    scale = (gamma * inv).reshape(Cout, 1)
    shift = (beta - mean * gamma * inv).reshape(Cout, 1)

    # ---- Phase 2: apply BN affine (lane-dense, channel-major) ----
    y = pl.pallas_call(
        bn_apply_kernel,
        grid=(N,),
        in_specs=[
            pl.BlockSpec((1, Cout, HW), lambda n: (n, 0, 0)),
            pl.BlockSpec((Cout, 1), lambda n: (0, 0)),
            pl.BlockSpec((Cout, 1), lambda n: (0, 0)),
        ],
        out_specs=pl.BlockSpec((1, Cout, HW), lambda n: (n, 0, 0)),
        out_shape=jax.ShapeDtypeStruct((N, Cout, HW), jnp.float32),
        compiler_params=cparams,
    )(conv_t, scale, shift)

    # Output is already channel-major: NCHW is a free reshape (no wrapper transpose / HBM pass).
    return y.reshape(N, Cout, H, W)


def _reference(x_nchw, weight, bias, gamma, beta):
    """Pure-JAX/XLA reference for Conv2d(k=3,s=1,p=1,bias=True) + train-mode BatchNorm2d."""
    conv = lax.conv_general_dilated(
        x_nchw, weight, window_strides=(STRIDE, STRIDE),
        padding=[(PAD, PAD), (PAD, PAD)],
        dimension_numbers=('NCHW', 'OIHW', 'NCHW'))
    conv = conv + bias.reshape(1, -1, 1, 1)
    mean = jnp.mean(conv, axis=(0, 2, 3), keepdims=True)
    var = jnp.mean(jnp.square(conv - mean), axis=(0, 2, 3), keepdims=True)
    return (conv - mean) * lax.rsqrt(var + EPS) * gamma.reshape(1, -1, 1, 1) \
        + beta.reshape(1, -1, 1, 1)


if __name__ == "__main__":
    N, Cin, Cout, H, W = 2, 4, 8, 16, 16

    key = jax.random.PRNGKey(0)
    k_x, k_w, k_b = jax.random.split(key, 3)
    x = jax.random.normal(k_x, (N, Cin, H, W), jnp.float32)
    # PyTorch Conv2d weight layout: (Cout, Cin, K, K)
    weight = 0.1 * jax.random.normal(k_w, (Cout, Cin, K, K), jnp.float32)
    bias = 0.05 * jax.random.normal(k_b, (Cout,), jnp.float32)
    gamma = jnp.ones((Cout,), jnp.float32)    # BatchNorm2d default affine init
    beta = jnp.zeros((Cout,), jnp.float32)

    out = jax.block_until_ready(conv_bn(x, weight, bias, gamma, beta))
    assert out.shape == (N, Cout, H, W), out.shape

    ref = jax.block_until_ready(_reference(x, weight, bias, gamma, beta))
    assert jnp.allclose(out, ref, atol=1e-4, rtol=1e-4), float(jnp.max(jnp.abs(out - ref)))

    print("KERNEL_OK")
</pallas_src>

<mosaic_0001>
module attributes {stable_mosaic.version = 11 : i64} {
  func.func @conv_stats_kernel(%arg0: i32, %arg1: memref<1x18x18x4xf32, #tpu.memory_space<vmem>>, %arg2: memref<36x8xf32, #tpu.memory_space<vmem>>, %arg3: memref<1x8x256xf32, #tpu.memory_space<vmem>>, %arg4: memref<1x2x8xf32, #tpu.memory_space<vmem>>, %arg5: memref<16x16x36xf32, #tpu.memory_space<vmem>>) attributes {dimension_semantics = [#tpu.dimension_semantics<parallel>], iteration_bounds = array<i64: 2>, scalar_prefetch = 0 : i64, scratch_operands = 1 : i64, tpu.core_type = #tpu.core_type<tc>, window_params = [{transform_indices = @transform_0, window_bounds = array<i64: 1, 18, 18, 4>}, {pipeline_mode = #tpu.pipeline_mode<synchronous>, transform_indices = @transform_1, window_bounds = array<i64: 36, 8>}, {transform_indices = @transform_2, window_bounds = array<i64: 1, 8, 256>}, {transform_indices = @transform_3, window_bounds = array<i64: 1, 2, 8>}]} {
    %c0 = arith.constant 0 : index
    %c0_0 = arith.constant 0 : index
    %c0_1 = arith.constant 0 : index
    %c0_2 = arith.constant 0 : index
    %0 = vector.load %arg1[%c0, %c0_0, %c0_1, %c0_2] : memref<1x18x18x4xf32, #tpu.memory_space<vmem>>, vector<1x16x16x4xf32>
    %1 = vector.shape_cast %0 : vector<1x16x16x4xf32> to vector<16x16x4xf32>
    %c0_3 = arith.constant 0 : index
    %c0_4 = arith.constant 0 : index
    %c0_5 = arith.constant 0 : index
    %2 = vector.load %arg5[%c0_3, %c0_4, %c0_5] : memref<16x16x36xf32, #tpu.memory_space<vmem>>, vector<16x16x4xf32>
    tpu.vector_store %arg5[%c0_3, %c0_4, %c0_5], %1 {strides = array<i32>} : memref<16x16x36xf32, #tpu.memory_space<vmem>>, vector<16x16x4xf32>,
    %c0_6 = arith.constant 0 : index
    %c0_7 = arith.constant 0 : index
    %c1 = arith.constant 1 : index
    %c0_8 = arith.constant 0 : index
    %3 = vector.load %arg1[%c0_6, %c0_7, %c1, %c0_8] : memref<1x18x18x4xf32, #tpu.memory_space<vmem>>, vector<1x16x16x4xf32>
    %4 = vector.shape_cast %3 : vector<1x16x16x4xf32> to vector<16x16x4xf32>
    %c0_9 = arith.constant 0 : index
    %c0_10 = arith.constant 0 : index
    %c4 = arith.constant 4 : index
    %5 = vector.load %arg5[%c0_9, %c0_10, %c4] : memref<16x16x36xf32, #tpu.memory_space<vmem>>, vector<16x16x4xf32>
    tpu.vector_store %arg5[%c0_9, %c0_10, %c4], %4 {strides = array<i32>} : memref<16x16x36xf32, #tpu.memory_space<vmem>>, vector<16x16x4xf32>,
    %c0_11 = arith.constant 0 : index
    %c0_12 = arith.constant 0 : index
    %c2 = arith.constant 2 : index
    %c0_13 = arith.constant 0 : index
    %6 = vector.load %arg1[%c0_11, %c0_12, %c2, %c0_13] : memref<1x18x18x4xf32, #tpu.memory_space<vmem>>, vector<1x16x16x4xf32>
    %7 = vector.shape_cast %6 : vector<1x16x16x4xf32> to vector<16x16x4xf32>
    %c0_14 = arith.constant 0 : index
    %c0_15 = arith.constant 0 : index
    %c8 = arith.constant 8 : index
    %8 = vector.load %arg5[%c0_14, %c0_15, %c8] : memref<16x16x36xf32, #tpu.memory_space<vmem>>, vector<16x16x4xf32>
    tpu.vector_store %arg5[%c0_14, %c0_15, %c8], %7 {strides = array<i32>} : memref<16x16x36xf32, #tpu.memory_space<vmem>>, vector<16x16x4xf32>,
    %c0_16 = arith.constant 0 : index
    %c1_17 = arith.constant 1 : index
    %c0_18 = arith.constant 0 : index
    %c0_19 = arith.constant 0 : index
    %9 = vector.load %arg1[%c0_16, %c1_17, %c0_18, %c0_19] : memref<1x18x18x4xf32, #tpu.memory_space<vmem>>, vector<1x16x16x4xf32>
    %10 = vector.shape_cast %9 : vector<1x16x16x4xf32> to vector<16x16x4xf32>
    %c0_20 = arith.constant 0 : index
    %c0_21 = arith.constant 0 : index
    %c12 = arith.constant 12 : index
    %11 = vector.load %arg5[%c0_20, %c0_21, %c12] : memref<16x16x36xf32, #tpu.memory_space<vmem>>, vector<16x16x4xf32>
    tpu.vector_store %arg5[%c0_20, %c0_21, %c12], %10 {strides = array<i32>} : memref<16x16x36xf32, #tpu.memory_space<vmem>>, vector<16x16x4xf32>,
    %c0_22 = arith.constant 0 : index
    %c1_23 = arith.constant 1 : index
    %c1_24 = arith.constant 1 : index
    %c0_25 = arith.constant 0 : index
    %12 = vector.load %arg1[%c0_22, %c1_23, %c1_24, %c0_25] : memref<1x18x18x4xf32, #tpu.memory_space<vmem>>, vector<1x16x16x4xf32>
    %13 = vector.shape_cast %12 : vector<1x16x16x4xf32> to vector<16x16x4xf32>
    %c0_26 = arith.constant 0 : index
    %c0_27 = arith.constant 0 : index
    %c16 = arith.constant 16 : index
    %14 = vector.load %arg5[%c0_26, %c0_27, %c16] : memref<16x16x36xf32, #tpu.memory_space<vmem>>, vector<16x16x4xf32>
    tpu.vector_store %arg5[%c0_26, %c0_27, %c16], %13 {strides = array<i32>} : memref<16x16x36xf32, #tpu.memory_space<vmem>>, vector<16x16x4xf32>,
    %c0_28 = arith.constant 0 : index
    %c1_29 = arith.constant 1 : index
    %c2_30 = arith.constant 2 : index
    %c0_31 = arith.constant 0 : index
    %15 = vector.load %arg1[%c0_28, %c1_29, %c2_30, %c0_31] : memref<1x18x18x4xf32, #tpu.memory_space<vmem>>, vector<1x16x16x4xf32>
    %16 = vector.shape_cast %15 : vector<1x16x16x4xf32> to vector<16x16x4xf32>
    %c0_32 = arith.constant 0 : index
    %c0_33 = arith.constant 0 : index
    %c20 = arith.constant 20 : index
    %17 = vector.load %arg5[%c0_32, %c0_33, %c20] : memref<16x16x36xf32, #tpu.memory_space<vmem>>, vector<16x16x4xf32>
    tpu.vector_store %arg5[%c0_32, %c0_33, %c20], %16 {strides = array<i32>} : memref<16x16x36xf32, #tpu.memory_space<vmem>>, vector<16x16x4xf32>,
    %c0_34 = arith.constant 0 : index
    %c2_35 = arith.constant 2 : index
    %c0_36 = arith.constant 0 : index
    %c0_37 = arith.constant 0 : index
    %18 = vector.load %arg1[%c0_34, %c2_35, %c0_36, %c0_37] : memref<1x18x18x4xf32, #tpu.memory_space<vmem>>, vector<1x16x16x4xf32>
    %19 = vector.shape_cast %18 : vector<1x16x16x4xf32> to vector<16x16x4xf32>
    %c0_38 = arith.constant 0 : index
    %c0_39 = arith.constant 0 : index
    %c24 = arith.constant 24 : index
    %20 = vector.load %arg5[%c0_38, %c0_39, %c24] : memref<16x16x36xf32, #tpu.memory_space<vmem>>, vector<16x16x4xf32>
    tpu.vector_store %arg5[%c0_38, %c0_39, %c24], %19 {strides = array<i32>} : memref<16x16x36xf32, #tpu.memory_space<vmem>>, vector<16x16x4xf32>,
    %c0_40 = arith.constant 0 : index
    %c2_41 = arith.constant 2 : index
    %c1_42 = arith.constant 1 : index
    %c0_43 = arith.constant 0 : index
    %21 = vector.load %arg1[%c0_40, %c2_41, %c1_42, %c0_43] : memref<1x18x18x4xf32, #tpu.memory_space<vmem>>, vector<1x16x16x4xf32>
    %22 = vector.shape_cast %21 : vector<1x16x16x4xf32> to vector<16x16x4xf32>
    %c0_44 = arith.constant 0 : index
    %c0_45 = arith.constant 0 : index
    %c28 = arith.constant 28 : index
    %23 = vector.load %arg5[%c0_44, %c0_45, %c28] : memref<16x16x36xf32, #tpu.memory_space<vmem>>, vector<16x16x4xf32>
    tpu.vector_store %arg5[%c0_44, %c0_45, %c28], %22 {strides = array<i32>} : memref<16x16x36xf32, #tpu.memory_space<vmem>>, vector<16x16x4xf32>,
    %c0_46 = arith.constant 0 : index
    %c2_47 = arith.constant 2 : index
    %c2_48 = arith.constant 2 : index
    %c0_49 = arith.constant 0 : index
    %24 = vector.load %arg1[%c0_46, %c2_47, %c2_48, %c0_49] : memref<1x18x18x4xf32, #tpu.memory_space<vmem>>, vector<1x16x16x4xf32>
    %25 = vector.shape_cast %24 : vector<1x16x16x4xf32> to vector<16x16x4xf32>
    %c0_50 = arith.constant 0 : index
    %c0_51 = arith.constant 0 : index
    %c32 = arith.constant 32 : index
    %26 = vector.load %arg5[%c0_50, %c0_51, %c32] : memref<16x16x36xf32, #tpu.memory_space<vmem>>, vector<16x16x4xf32>
    tpu.vector_store %arg5[%c0_50, %c0_51, %c32], %25 {strides = array<i32>} : memref<16x16x36xf32, #tpu.memory_space<vmem>>, vector<16x16x4xf32>,
    %c0_52 = arith.constant 0 : index
    %c0_53 = arith.constant 0 : index
    %c0_54 = arith.constant 0 : index
    %27 = vector.load %arg5[%c0_52, %c0_53, %c0_54] : memref<16x16x36xf32, #tpu.memory_space<vmem>>, vector<16x16x36xf32>
    %28 = vector.shape_cast %27 : vector<16x16x36xf32> to vector<256x36xf32>
    %c0_55 = arith.constant 0 : index
    %c0_56 = arith.constant 0 : index
    %29 = vector.load %arg2[%c0_55, %c0_56] : memref<36x8xf32, #tpu.memory_space<vmem>>, vector<36x8xf32>
    %cst = arith.constant dense<0.000000e+00> : vector<256x8xf32>
    %30 = tpu.matmul %28, %29, %cst {dimension_numbers = #tpu.dot_dimension_numbers<[1], [0], [0], [1], [0, 0, 1, 1], [], []>} : vector<256x36xf32>, vector<36x8xf32>, vector<256x8xf32> -> vector<256x8xf32>
    %cst_57 = arith.constant dense<0.000000e+00> : vector<8xf32>
    %31 = vector.multi_reduction <add>, %30, %cst_57 [0] : vector<256x8xf32> to vector<8xf32>
    %32 = vector.shape_cast %31 : vector<8xf32> to vector<1x8xf32>
    %c0_58 = arith.constant 0 : index
    %c0_59 = arith.constant 0 : index
    %c0_60 = arith.constant 0 : index
    %33 = vector.load %arg4[%c0_58, %c0_59, %c0_60] : memref<1x2x8xf32, #tpu.memory_space<vmem>>, vector<1x1x8xf32>
    %34 = vector.shape_cast %33 : vector<1x1x8xf32> to vector<1x8xf32>
    %35 = vector.shape_cast %32 : vector<1x8xf32> to vector<1x1x8xf32>
    tpu.vector_store %arg4[%c0_58, %c0_59, %c0_60], %35 {strides = array<i32>} : memref<1x2x8xf32, #tpu.memory_space<vmem>>, vector<1x1x8xf32>,
    %36 = arith.mulf %30, %30 : vector<256x8xf32>
    %cst_61 = arith.constant dense<0.000000e+00> : vector<8xf32>
    %37 = vector.multi_reduction <add>, %36, %cst_61 [0] : vector<256x8xf32> to vector<8xf32>
    %38 = vector.shape_cast %37 : vector<8xf32> to vector<1x8xf32>
    %c0_62 = arith.constant 0 : index
    %c1_63 = arith.constant 1 : index
    %c0_64 = arith.constant 0 : index
    %39 = vector.load %arg4[%c0_62, %c1_63, %c0_64] : memref<1x2x8xf32, #tpu.memory_space<vmem>>, vector<1x1x8xf32>
    %40 = vector.shape_cast %39 : vector<1x1x8xf32> to vector<1x8xf32>
    %41 = vector.shape_cast %38 : vector<1x8xf32> to vector<1x1x8xf32>
    tpu.vector_store %arg4[%c0_62, %c1_63, %c0_64], %41 {strides = array<i32>} : memref<1x2x8xf32, #tpu.memory_space<vmem>>, vector<1x1x8xf32>,
    %42 = tpu.transpose %30, [1, 0] : vector<256x8xf32> -> vector<8x256xf32>
    %c0_65 = arith.constant 0 : index
    %c0_66 = arith.constant 0 : index
    %c0_67 = arith.constant 0 : index
    %43 = vector.load %arg3[%c0_65, %c0_66, %c0_67] : memref<1x8x256xf32, #tpu.memory_space<vmem>>, vector<1x8x256xf32>
    %44 = vector.shape_cast %43 : vector<1x8x256xf32> to vector<8x256xf32>
    %45 = vector.shape_cast %42 : vector<8x256xf32> to vector<1x8x256xf32>
    tpu.vector_store %arg3[%c0_65, %c0_66, %c0_67], %45 {strides = array<i32>} : memref<1x8x256xf32, #tpu.memory_space<vmem>>, vector<1x8x256xf32>,
    return
  }
  func.func @transform_0(%arg0: i32) -> (i32, i32, i32, i32) {
    %c0_i32 = arith.constant 0 : i32
    %c0_i32_0 = arith.constant 0 : i32
    %c0_i32_1 = arith.constant 0 : i32
    %c0_i32_2 = arith.constant 0 : i32
    return %arg0, %c0_i32, %c0_i32_0, %c0_i32_1 : i32, i32, i32, i32
  }
  func.func @transform_1(%arg0: i32) -> (i32, i32) {
    %c0_i32 = arith.constant 0 : i32
    %c0_i32_0 = arith.constant 0 : i32
    %c0_i32_1 = arith.constant 0 : i32
    return %c0_i32, %c0_i32_0 : i32, i32
  }
  func.func @transform_2(%arg0: i32) -> (i32, i32, i32) {
    %c0_i32 = arith.constant 0 : i32
    %c0_i32_0 = arith.constant 0 : i32
    %c0_i32_1 = arith.constant 0 : i32
    return %arg0, %c0_i32, %c0_i32_0 : i32, i32, i32
  }
  func.func @transform_3(%arg0: i32) -> (i32, i32, i32) {
    %c0_i32 = arith.constant 0 : i32
    %c0_i32_0 = arith.constant 0 : i32
    %c0_i32_1 = arith.constant 0 : i32
    return %arg0, %c0_i32, %c0_i32_0 : i32, i32, i32
  }
}

module attributes {stable_mosaic.version = 11 : i64} {
  func.func @bn_apply_kernel(%arg0: i32, %arg1: memref<1x8x256xf32, #tpu.memory_space<vmem>>, %arg2: memref<8x1xf32, #tpu.memory_space<vmem>>, %arg3: memref<8x1xf32, #tpu.memory_space<vmem>>, %arg4: memref<1x8x256xf32, #tpu.memory_space<vmem>>) attributes {dimension_semantics = [#tpu.dimension_semantics<parallel>], iteration_bounds = array<i64: 2>, scalar_prefetch = 0 : i64, scratch_operands = 0 : i64, tpu.core_type = #tpu.core_type<tc>, window_params = [{transform_indices = @transform_0, window_bounds = array<i64: 1, 8, 256>}, {pipeline_mode = #tpu.pipeline_mode<synchronous>, transform_indices = @transform_1, window_bounds = array<i64: 8, 1>}, {pipeline_mode = #tpu.pipeline_mode<synchronous>, transform_indices = @transform_2, window_bounds = array<i64: 8, 1>}, {transform_indices = @transform_3, window_bounds = array<i64: 1, 8, 256>}]} {
    %c0 = arith.constant 0 : index
    %c0_0 = arith.constant 0 : index
    %c0_1 = arith.constant 0 : index
    %0 = vector.load %arg1[%c0, %c0_0, %c0_1] : memref<1x8x256xf32, #tpu.memory_space<vmem>>, vector<1x8x256xf32>
    %1 = vector.shape_cast %0 : vector<1x8x256xf32> to vector<8x256xf32>
    %c0_2 = arith.constant 0 : index
    %c0_3 = arith.constant 0 : index
    %2 = vector.load %arg2[%c0_2, %c0_3] : memref<8x1xf32, #tpu.memory_space<vmem>>, vector<8x1xf32>
    %3 = vector.broadcast %2 : vector<8x1xf32> to vector<8x256xf32>
    %4 = arith.mulf %1, %3 : vector<8x256xf32>
    %c0_4 = arith.constant 0 : index
    %c0_5 = arith.constant 0 : index
    %5 = vector.load %arg3[%c0_4, %c0_5] : memref<8x1xf32, #tpu.memory_space<vmem>>, vector<8x1xf32>
    %6 = vector.broadcast %5 : vector<8x1xf32> to vector<8x256xf32>
    %7 = arith.addf %4, %6 : vector<8x256xf32>
    %c0_6 = arith.constant 0 : index
    %c0_7 = arith.constant 0 : index
    %c0_8 = arith.constant 0 : index
    %8 = vector.load %arg4[%c0_6, %c0_7, %c0_8] : memref<1x8x256xf32, #tpu.memory_space<vmem>>, vector<1x8x256xf32>
    %9 = vector.shape_cast %8 : vector<1x8x256xf32> to vector<8x256xf32>
    %10 = vector.shape_cast %7 : vector<8x256xf32> to vector<1x8x256xf32>
    tpu.vector_store %arg4[%c0_6, %c0_7, %c0_8], %10 {strides = array<i32>} : memref<1x8x256xf32, #tpu.memory_space<vmem>>, vector<1x8x256xf32>,
    return
  }
  func.func @transform_0(%arg0: i32) -> (i32, i32, i32) {
    %c0_i32 = arith.constant 0 : i32
    %c0_i32_0 = arith.constant 0 : i32
    %c0_i32_1 = arith.constant 0 : i32
    return %arg0, %c0_i32, %c0_i32_0 : i32, i32, i32
  }
  func.func @transform_1(%arg0: i32) -> (i32, i32) {
    %c0_i32 = arith.constant 0 : i32
    %c0_i32_0 = arith.constant 0 : i32
    %c0_i32_1 = arith.constant 0 : i32
    return %c0_i32, %c0_i32_0 : i32, i32
  }
  func.func @transform_2(%arg0: i32) -> (i32, i32) {
    %c0_i32 = arith.constant 0 : i32
    %c0_i32_0 = arith.constant 0 : i32
    %c0_i32_1 = arith.constant 0 : i32
    return %c0_i32, %c0_i32_0 : i32, i32
  }
  func.func @transform_3(%arg0: i32) -> (i32, i32, i32) {
    %c0_i32 = arith.constant 0 : i32
    %c0_i32_0 = arith.constant 0 : i32
    %c0_i32_1 = arith.constant 0 : i32
    return %arg0, %c0_i32, %c0_i32_0 : i32, i32, i32
  }
}

</mosaic_0001>

<llo_original>
// kernel: conv_bn.3
$region0: #{conv_bn.3}
  #allocation0 [shape = 'u32[]', space=smem, size = 0x4, offset = 0x4, fixed_abs, tag = 'smem constant byte address 0x4 - core index']
  #allocation1 [shape = 'u32[144,128]{1,0:T(1,128)}', space=vmem, size = 0x12000, scoped, tag = 'internal scratch']
  %s0 = inlined_call_operand.vmem [shape: f32[2,8,256], index: 0, kind: input, shape index: {}]
  %s1 = inlined_call_operand.vmem [shape: f32[8,1], index: 1, kind: input, shape index: {}]
  %s2 = inlined_call_operand.vmem [shape: f32[8,1], index: 2, kind: input, shape index: {}]
  %s3 = inlined_call_operand.vmem [shape: f32[2,8,256], index: 3, kind: output, shape index: {}]
  %s4 = sld [smem:[#allocation0]]
  $region45: #{conv_bn.3} parent=0
    _
  %s6 = ssub.s32 1, %s4
  %s7 = scalar_select 0, %s6, %s4
  loop: start=0, step=1, limit=4
  $region2: #{conv_bn.3} parent=0 // loop_pre_header
    _
  $region3: #{conv_bn.3} parent=0 // loop_header
    %s9 = sphi 0, %s13
    %p10 = scmp.ge.s32.totalorder %s9, 4
    %s19 = sphi 0, %s21
    %s22 = sphi 0, %s19
    %s23 = sphi 0, %s22
    %s39 = sphi 0, %s23
    %s43 = sphi 0, %s43
    %s45 = sphi 0, %s43
    %s46 = sphi 0, %s45
    %s60 = sphi 0, %s46
    %s64 = sphi 0, %s64
    %s66 = sphi 0, %s64
    %s67 = sphi 0, %s66
    %s81 = sphi 0, %s67
    %s87 = sphi 0, %s89
    %s90 = sphi 0, %s87
    %s91 = sphi 0, %s90
    %s107 = sphi 0, %s91
  $region4: #{conv_bn.3} parent=0 // loop_header_branch
    %12 = sbr.rel (%p10) target = $region8
  $region5: #{conv_bn.3} parent=0 // loop_body
    %s14 = ssub.s32 %s9, 1
    %s15 = ssub.s32 %s9, 2
    %s16 = sadd.s32 %s9, 1
    %s17 = ssub.s32 %s9, %s16
    %p18 = scmp.eq.s32.totalorder %s17, 0
    %s20 = sadd.s32 %s19, 1
    %s21 = scalar_select %p18, %s19, %s20
    %p24 = pneg %p18
    %p25 = scmp.eq.s32.totalorder %s9, 1
    %p26 = por %p24, %p25
    %p27 = scmp.ne.s32.totalorder %s19, %s22
    %p28 = scmp.eq.s32.totalorder %s9, 0
    %p29 = por %p27, %p28
    %p30 = scmp.ne.s32.totalorder %s19, %s22
    %p31 = scmp.eq.s32.totalorder %s14, 1
    %p32 = por %p30, %p31
    %p33 = scmp.ne.s32.totalorder %s22, %s23
    %p34 = scmp.eq.s32.totalorder %s14, 0
    %p35 = por %p33, %p34
    %p36 = scmp.ne.s32.totalorder %s22, %s23
    %p37 = scmp.eq.s32.totalorder %s15, 1
    %p38 = por %p36, %p37
    %p40 = scmp.ne.s32.totalorder %s23, %s39
    %p41 = scmp.eq.s32.totalorder %s15, 0
    %p42 = por %p40, %p41
    %s44 = sadd.s32 %s43, 1
    %p47 = scmp.eq.s32.totalorder %s9, 1
    %p48 = scmp.ne.s32.totalorder %s43, %s45
    %p49 = scmp.eq.s32.totalorder %s9, 0
    %p50 = por %p48, %p49
    %p51 = scmp.ne.s32.totalorder %s43, %s45
    %p52 = scmp.eq.s32.totalorder %s14, 1
    %p53 = por %p51, %p52
    %p54 = scmp.ne.s32.totalorder %s45, %s46
    %p55 = scmp.eq.s32.totalorder %s14, 0
    %p56 = por %p54, %p55
    %p57 = scmp.ne.s32.totalorder %s45, %s46
    %p58 = scmp.eq.s32.totalorder %s15, 1
    %p59 = por %p57, %p58
    %p61 = scmp.ne.s32.totalorder %s46, %s60
    %p62 = scmp.eq.s32.totalorder %s15, 0
    %p63 = por %p61, %p62
    %s65 = sadd.s32 %s64, 1
    %p68 = scmp.eq.s32.totalorder %s9, 1
    %p69 = scmp.ne.s32.totalorder %s64, %s66
    %p70 = scmp.eq.s32.totalorder %s9, 0
    %p71 = por %p69, %p70
    %p72 = scmp.ne.s32.totalorder %s64, %s66
    %p73 = scmp.eq.s32.totalorder %s14, 1
    %p74 = por %p72, %p73
    %p75 = scmp.ne.s32.totalorder %s66, %s67
    %p76 = scmp.eq.s32.totalorder %s14, 0
    %p77 = por %p75, %p76
    %p78 = scmp.ne.s32.totalorder %s66, %s67
    %p79 = scmp.eq.s32.totalorder %s15, 1
    %p80 = por %p78, %p79
    %p82 = scmp.ne.s32.totalorder %s67, %s81
    %p83 = scmp.eq.s32.totalorder %s15, 0
    %p84 = por %p82, %p83
    %s85 = ssub.s32 %s9, %s16
    %p86 = scmp.eq.s32.totalorder %s85, 0
    %s88 = sadd.s32 %s87, 1
    %s89 = scalar_select %p86, %s87, %s88
    %p92 = pneg %p86
    %p93 = scmp.eq.s32.totalorder %s9, 1
    %p94 = por %p92, %p93
    %p95 = scmp.ne.s32.totalorder %s87, %s90
    %p96 = scmp.eq.s32.totalorder %s9, 0
    %p97 = por %p95, %p96
    %p98 = scmp.ne.s32.totalorder %s87, %s90
    %p99 = scmp.eq.s32.totalorder %s14, 1
    %p100 = por %p98, %p99
    %p101 = scmp.ne.s32.totalorder %s90, %s91
    %p102 = scmp.eq.s32.totalorder %s14, 0
    %p103 = por %p101, %p102
    %p104 = scmp.ne.s32.totalorder %s90, %s91
    %p105 = scmp.eq.s32.totalorder %s15, 1
    %p106 = por %p104, %p105
    %p108 = scmp.ne.s32.totalorder %s91, %s107
    %p109 = scmp.eq.s32.totalorder %s15, 0
    %p110 = por %p108, %p109
    %p111 = scmp.le.s32.totalorder 1, %s9
    %p112 = scmp.lt.s32.totalorder %s9, 3
    %p113 = pnand %p111, %p112
    %p114 = pneg %p113
    // Predicated region
    $region9: #{conv_bn.3} parent=5 // pred_check
      _
    $region10: #{conv_bn.3} parent=5 // pred_check_branch
      %116 = sbr.rel (%p113) target = $region12
    $region11: #{conv_bn.3} parent=5 // pred_region
      %s117 = ssub.s32 %s9, 1
      // Predicated region
      $region13: #{conv_bn.3} parent=11 // pred_check
        %p118 = pneg %p56
      $region14: #{conv_bn.3} parent=11 // pred_check_branch
        %120 = sbr.rel (%p118) target = $region16
      $region15: #{conv_bn.3} parent=11 // pred_region
        _
      $region16: #{conv_bn.3} parent=11 // pred_fallthru
        _
      // Predicated region
      $region17: #{conv_bn.3} parent=11 // pred_check
        %p121 = pneg %p77
      $region18: #{conv_bn.3} parent=11 // pred_check_branch
        %123 = sbr.rel (%p121) target = $region20
      $region19: #{conv_bn.3} parent=11 // pred_region
        _
      $region20: #{conv_bn.3} parent=11 // pred_fallthru
        _
    $region12: #{conv_bn.3} parent=5 // pred_fallthru
      _
    %p124 = scmp.lt.s32.totalorder %s9, 2
    // Predicated region
    $region21: #{conv_bn.3} parent=5 // pred_check
      %p125 = pneg %p124
    $region22: #{conv_bn.3} parent=5 // pred_check_branch
      %127 = sbr.rel (%p125) target = $region24
    $region23: #{conv_bn.3} parent=5 // pred_region
      // Predicated region
      $region25: #{conv_bn.3} parent=23 // pred_check
        %p128 = pneg %p29
      $region26: #{conv_bn.3} parent=23 // pred_check_branch
        %130 = sbr.rel (%p128) target = $region28
      $region27: #{conv_bn.3} parent=23 // pred_region
        %p131 = scmp.lt.s32.totalorder %s9, 1
        %s132 = scalar_select %p131, %s9, 1
        %s133 = smul.addr %s132, 2
        %s134 = smul.addr %s133, 8
        %s135 = scalar_lea.vmem %s0, %s134
      $region28: #{conv_bn.3} parent=23 // pred_fallthru
        _
    $region24: #{conv_bn.3} parent=5 // pred_fallthru
      _
    %p136 = scmp.le.s32.totalorder 1, %s9
    %p137 = scmp.lt.s32.totalorder %s9, 3
    %p138 = pnand %p136, %p137
    %p139 = pneg %p138
    // Predicated region
    $region29: #{conv_bn.3} parent=5 // pred_check
      _
    $region30: #{conv_bn.3} parent=5 // pred_check_branch
      %141 = sbr.rel (%p138) target = $region32
    $region31: #{conv_bn.3} parent=5 // pred_region
      %s142 = ssub.s32 %s9, 1
      %p143 = scmp.lt.s32.totalorder %s14, 1
      %s144 = scalar_select %p143, %s14, 1
      %s145 = smul.addr %s144, 2
      %s146 = smul.addr %s145, 8
      %s147 = scalar_lea.vmem %s0, %s146
      %p148 = pneg %p35
      %p149 = pneg %p32
      %p150 = pneg %p56
      %p151 = pneg %p53
      %p152 = pneg %p77
      %p153 = pneg %p74
      %p154 = pneg %p103
      %p155 = pneg %p100
      %p156 = scmp.lt.s32.totalorder %s14, 1
      %s157 = scalar_select %p156, %s14, 1
      %s158 = smul.addr %s157, 2
      %s159 = smul.addr %s158, 8
      %s160 = scalar_lea.vmem %s3, %s159
      %p161 = scmp.lt.s32.totalorder %s14, 1
      %s162 = scalar_select %p161, %s14, 1
      %s163 = smul.addr %s162, 2
      %s164 = smul.addr %s163, 8
      %s165 = scalar_lea.vmem %s0, %s164
      %p166 = scmp.lt.s32.totalorder %s14, 1
      %s167 = scalar_select %p166, %s14, 1
      %s168 = smul.addr %s167, 2
      %s169 = smul.addr %s168, 8
      %s170 = scalar_lea.vmem %s3, %s169
      %v171 = vld [vmem:[%s165] sm:$0xff]
      %v172 = vld [vmem:[%s165 + $0x8] sm:$0xff]
      %v173 = vld [vmem:[%s1] sm:$0xff]
      %175 = vset.pattern.permute.xlu0 0
      %176 = vperm.xlu0 %175, %v173
      %v177 = vpop.permute.xlu0 %176
      %v179 = vmul.f32 %v171, %v177
      %v180 = vmul.f32 %v172, %v177
      %v181 = vld [vmem:[%s2] sm:$0xff]
      %183 = vset.pattern.permute.xlu0 0
      %184 = vperm.xlu0 %183, %v181
      %v185 = vpop.permute.xlu0 %184
      %v187 = vadd.f32 %v179, %v185
      %v188 = vadd.f32 %v180, %v185
      %189 = vst [vmem:[%s170] sm:$0xff] %v187
      %190 = vst [vmem:[%s170 + $0x8] sm:$0xff] %v188
      %p191 = scmp.lt.s32.totalorder %s14, 1
      %s192 = scalar_select %p191, %s14, 1
      %s193 = smul.addr %s192, 2
      %s194 = smul.addr %s193, 8
      %s195 = scalar_lea.vmem %s3, %s194
      // Predicated region
      $region33: #{conv_bn.3} parent=31 // pred_check
        %p196 = pneg %p100
      $region34: #{conv_bn.3} parent=31 // pred_check_branch
        %198 = sbr.rel (%p196) target = $region36
      $region35: #{conv_bn.3} parent=31 // pred_region
        _
      $region36: #{conv_bn.3} parent=31 // pred_fallthru
        _
    $region32: #{conv_bn.3} parent=5 // pred_fallthru
      _
    %p199 = scmp.le.s32.totalorder 2, %s9
    // Predicated region
    $region37: #{conv_bn.3} parent=5 // pred_check
      %p200 = pneg %p199
    $region38: #{conv_bn.3} parent=5 // pred_check_branch
      %202 = sbr.rel (%p200) target = $region40
    $region39: #{conv_bn.3} parent=5 // pred_region
      %s203 = ssub.s32 %s9, 2
      // Predicated region
      $region41: #{conv_bn.3} parent=39 // pred_check
        %p204 = pneg %p106
      $region42: #{conv_bn.3} parent=39 // pred_check_branch
        %206 = sbr.rel (%p204) target = $region44
      $region43: #{conv_bn.3} parent=39 // pred_region
        %p207 = scmp.lt.s32.totalorder %s15, 1
        %s208 = scalar_select %p207, %s15, 1
        %s209 = smul.addr %s208, 2
        %s210 = smul.addr %s209, 8
        %s211 = scalar_lea.vmem %s3, %s210
      $region44: #{conv_bn.3} parent=39 // pred_fallthru
        _
    $region40: #{conv_bn.3} parent=5 // pred_fallthru
      _
  $region6: #{conv_bn.3} parent=0 // loop_footer
    %s13 = sadd.s32 1, %s9
  $region7: #{conv_bn.3} parent=0 // loop_footer_branch
    %8 = sbr.rel target = $region3
  $region8: #{conv_bn.3} parent=0 // loop_exit
    _

// kernel: conv_bn.2
$region0: #{conv_bn.2}
  #allocation0 [shape = 'u32[]', space=smem, size = 0x4, offset = 0x4, fixed_abs, tag = 'smem constant byte address 0x4 - core index']
  #allocation1 [shape = 'u32[144,128]{1,0:T(1,128)}', space=vmem, size = 0x12000, scoped, tag = 'internal scratch']
  #allocation2 [shape = 'f32[16,16,36]{2,1,0:T(8,128)}', space=vmem, size = 0x20000, scoped, tag = 'scratch operand']
  %s0 = inlined_call_operand.vmem [shape: f32[2,18,18,4], index: 0, kind: input, shape index: {}]
  %s1 = inlined_call_operand.vmem [shape: f32[36,8], index: 1, kind: input, shape index: {}]
  %s2 = inlined_call_operand.vmem [shape: f32[2,8,256], index: 2, kind: output, shape index: {0}]
  %s3 = inlined_call_operand.vmem [shape: f32[2,2,8], index: 3, kind: output, shape index: {1}]
  %4 = xla_tuple %s2, %s3
  %s5 = sld [smem:[#allocation0]]
  $region49: #{conv_bn.2} parent=0
    _
  %s7 = ssub.s32 1, %s5
  %s8 = scalar_select 0, %s7, %s5
  loop: start=0, step=1, limit=4
  $region2: #{conv_bn.2} parent=0 // loop_pre_header
    _
  $region3: #{conv_bn.2} parent=0 // loop_header
    %s10 = sphi 0, %s14
    %p11 = scmp.ge.s32.totalorder %s10, 4
    %s20 = sphi 0, %s22
    %s23 = sphi 0, %s20
    %s24 = sphi 0, %s23
    %s40 = sphi 0, %s24
    %s44 = sphi 0, %s44
    %s46 = sphi 0, %s44
    %s47 = sphi 0, %s46
    %s61 = sphi 0, %s47
    %s67 = sphi 0, %s69
    %s70 = sphi 0, %s67
    %s71 = sphi 0, %s70
    %s87 = sphi 0, %s71
    %s93 = sphi 0, %s95
    %s96 = sphi 0, %s93
    %s97 = sphi 0, %s96
    %s113 = sphi 0, %s97
  $region4: #{conv_bn.2} parent=0 // loop_header_branch
    %13 = sbr.rel (%p11) target = $region8
  $region5: #{conv_bn.2} parent=0 // loop_body
    %s15 = ssub.s32 %s10, 1
    %s16 = ssub.s32 %s10, 2
    %s17 = sadd.s32 %s10, 1
    %s18 = ssub.s32 %s10, %s17
    %p19 = scmp.eq.s32.totalorder %s18, 0
    %s21 = sadd.s32 %s20, 1
    %s22 = scalar_select %p19, %s20, %s21
    %p25 = pneg %p19
    %p26 = scmp.eq.s32.totalorder %s10, 1
    %p27 = por %p25, %p26
    %p28 = scmp.ne.s32.totalorder %s20, %s23
    %p29 = scmp.eq.s32.totalorder %s10, 0
    %p30 = por %p28, %p29
    %p31 = scmp.ne.s32.totalorder %s20, %s23
    %p32 = scmp.eq.s32.totalorder %s15, 1
    %p33 = por %p31, %p32
    %p34 = scmp.ne.s32.totalorder %s23, %s24
    %p35 = scmp.eq.s32.totalorder %s15, 0
    %p36 = por %p34, %p35
    %p37 = scmp.ne.s32.totalorder %s23, %s24
    %p38 = scmp.eq.s32.totalorder %s16, 1
    %p39 = por %p37, %p38
    %p41 = scmp.ne.s32.totalorder %s24, %s40
    %p42 = scmp.eq.s32.totalorder %s16, 0
    %p43 = por %p41, %p42
    %s45 = sadd.s32 %s44, 1
    %p48 = scmp.eq.s32.totalorder %s10, 1
    %p49 = scmp.ne.s32.totalorder %s44, %s46
    %p50 = scmp.eq.s32.totalorder %s10, 0
    %p51 = por %p49, %p50
    %p52 = scmp.ne.s32.totalorder %s44, %s46
    %p53 = scmp.eq.s32.totalorder %s15, 1
    %p54 = por %p52, %p53
    %p55 = scmp.ne.s32.totalorder %s46, %s47
    %p56 = scmp.eq.s32.totalorder %s15, 0
    %p57 = por %p55, %p56
    %p58 = scmp.ne.s32.totalorder %s46, %s47
    %p59 = scmp.eq.s32.totalorder %s16, 1
    %p60 = por %p58, %p59
    %p62 = scmp.ne.s32.totalorder %s47, %s61
    %p63 = scmp.eq.s32.totalorder %s16, 0
    %p64 = por %p62, %p63
    %s65 = ssub.s32 %s10, %s17
    %p66 = scmp.eq.s32.totalorder %s65, 0
    %s68 = sadd.s32 %s67, 1
    %s69 = scalar_select %p66, %s67, %s68
    %p72 = pneg %p66
    %p73 = scmp.eq.s32.totalorder %s10, 1
    %p74 = por %p72, %p73
    %p75 = scmp.ne.s32.totalorder %s67, %s70
    %p76 = scmp.eq.s32.totalorder %s10, 0
    %p77 = por %p75, %p76
    %p78 = scmp.ne.s32.totalorder %s67, %s70
    %p79 = scmp.eq.s32.totalorder %s15, 1
    %p80 = por %p78, %p79
    %p81 = scmp.ne.s32.totalorder %s70, %s71
    %p82 = scmp.eq.s32.totalorder %s15, 0
    %p83 = por %p81, %p82
    %p84 = scmp.ne.s32.totalorder %s70, %s71
    %p85 = scmp.eq.s32.totalorder %s16, 1
    %p86 = por %p84, %p85
    %p88 = scmp.ne.s32.totalorder %s71, %s87
    %p89 = scmp.eq.s32.totalorder %s16, 0
    %p90 = por %p88, %p89
    %s91 = ssub.s32 %s10, %s17
    %p92 = scmp.eq.s32.totalorder %s91, 0
    %s94 = sadd.s32 %s93, 1
    %s95 = scalar_select %p92, %s93, %s94
    %p98 = pneg %p92
    %p99 = scmp.eq.s32.totalorder %s10, 1
    %p100 = por %p98, %p99
    %p101 = scmp.ne.s32.totalorder %s93, %s96
    %p102 = scmp.eq.s32.totalorder %s10, 0
    %p103 = por %p101, %p102
    %p104 = scmp.ne.s32.totalorder %s93, %s96
    %p105 = scmp.eq.s32.totalorder %s15, 1
    %p106 = por %p104, %p105
    %p107 = scmp.ne.s32.totalorder %s96, %s97
    %p108 = scmp.eq.s32.totalorder %s15, 0
    %p109 = por %p107, %p108
    %p110 = scmp.ne.s32.totalorder %s96, %s97
    %p111 = scmp.eq.s32.totalorder %s16, 1
    %p112 = por %p110, %p111
    %p114 = scmp.ne.s32.totalorder %s97, %s113
    %p115 = scmp.eq.s32.totalorder %s16, 0
    %p116 = por %p114, %p115
    %p117 = scmp.le.s32.totalorder 1, %s10
    %p118 = scmp.lt.s32.totalorder %s10, 3
    %p119 = pnand %p117, %p118
    %p120 = pneg %p119
    // Predicated region
    $region9: #{conv_bn.2} parent=5 // pred_check
      _
    $region10: #{conv_bn.2} parent=5 // pred_check_branch
      %122 = sbr.rel (%p119) target = $region12
    $region11: #{conv_bn.2} parent=5 // pred_region
      %s123 = ssub.s32 %s10, 1
      // Predicated region
      $region13: #{conv_bn.2} parent=11 // pred_check
        %p124 = pneg %p57
      $region14: #{conv_bn.2} parent=11 // pred_check_branch
        %126 = sbr.rel (%p124) target = $region16
      $region15: #{conv_bn.2} parent=11 // pred_region
        _
      $region16: #{conv_bn.2} parent=11 // pred_fallthru
        _
    $region12: #{conv_bn.2} parent=5 // pred_fallthru
      _
    %p127 = scmp.lt.s32.totalorder %s10, 2
    // Predicated region
    $region17: #{conv_bn.2} parent=5 // pred_check
      %p128 = pneg %p127
    $region18: #{conv_bn.2} parent=5 // pred_check_branch
      %130 = sbr.rel (%p128) target = $region20
    $region19: #{conv_bn.2} parent=5 // pred_region
      // Predicated region
      $region21: #{conv_bn.2} parent=19 // pred_check
        %p131 = pneg %p30
      $region22: #{conv_bn.2} parent=19 // pred_check_branch
        %133 = sbr.rel (%p131) target = $region24
      $region23: #{conv_bn.2} parent=19 // pred_region
        %p134 = scmp.lt.s32.totalorder %s10, 1
        %s135 = scalar_select %p134, %s10, 1
        %s136 = smul.addr %s135, 54
        %s137 = smul.addr %s136, 8
        %s138 = scalar_lea.vmem %s0, %s137
      $region24: #{conv_bn.2} parent=19 // pred_fallthru
        _
    $region20: #{conv_bn.2} parent=5 // pred_fallthru
      _
    %p139 = scmp.le.s32.totalorder 1, %s10
    %p140 = scmp.lt.s32.totalorder %s10, 3
    %p141 = pnand %p139, %p140
    %p142 = pneg %p141
    // Predicated region
    $region25: #{conv_bn.2} parent=5 // pred_check
      _
    $region26: #{conv_bn.2} parent=5 // pred_check_branch
      %144 = sbr.rel (%p141) target = $region28
    $region27: #{conv_bn.2} parent=5 // pred_region
      %s145 = ssub.s32 %s10, 1
      %p146 = scmp.lt.s32.totalorder %s15, 1
      %s147 = scalar_select %p146, %s15, 1
      %s148 = smul.addr %s147, 54
      %s149 = smul.addr %s148, 8
      %s150 = scalar_lea.vmem %s0, %s149
      %p151 = pneg %p36
      %p152 = pneg %p33
      %p153 = pneg %p57
      %p154 = pneg %p54
      %p155 = pneg %p83
      %p156 = pneg %p80
      %p157 = scmp.lt.s32.totalorder %s15, 1
      %s158 = scalar_select %p157, %s15, 1
      %s159 = smul.addr %s158, 2
      %s160 = smul.addr %s159, 8
      %s161 = scalar_lea.vmem %s2, %s160
      %p162 = pneg %p109
      %p163 = pneg %p106
      %p164 = scmp.lt.s32.totalorder %s15, 1
      %s165 = scalar_select %p164, %s15, 1
      %s166 = smul.addr %s165, 2
      %s167 = scalar_lea.vmem %s3, %s166
      %p168 = scmp.lt.s32.totalorder %s15, 1
      %s169 = scalar_select %p168, %s15, 1
      %s170 = smul.addr %s169, 54
      %s171 = smul.addr %s170, 8
      %s172 = scalar_lea.vmem %s0, %s171
      %p173 = scmp.lt.s32.totalorder %s15, 1
      %s174 = scalar_select %p173, %s15, 1
      %s175 = smul.addr %s174, 2
      %s176 = smul.addr %s175, 8
      %s177 = scalar_lea.vmem %s2, %s176
      %p178 = scmp.lt.s32.totalorder %s15, 1
      %s179 = scalar_select %p178, %s15, 1
      %s180 = smul.addr %s179, 2
      %s181 = scalar_lea.vmem %s3, %s180
      %v182 = vld [vmem:[%s172] sm:$0xff]
      %v183 = vld [vmem:[%s172 + $0x8] sm:$0xff]
      %v184 = vld [vmem:[%s172 + $0x18] sm:$0xff]
      %v185 = vld [vmem:[%s172 + $0x20] sm:$0xff]
      %v186 = vld [vmem:[%s172 + $0x30] sm:$0xff]
      %v187 = vld [vmem:[%s172 + $0x38] sm:$0xff]
      %v188 = vld [vmem:[%s172 + $0x48] sm:$0xff]
      %v189 = vld [vmem:[%s172 + $0x50] sm:$0xff]
      %v190 = vld [vmem:[%s172 + $0x60] sm:$0xff]
      %v191 = vld [vmem:[%s172 + $0x68] sm:$0xff]
      %v192 = vld [vmem:[%s172 + $0x78] sm:$0xff]
      %v193 = vld [vmem:[%s172 + $0x80] sm:$0xff]
      %v194 = vld [vmem:[%s172 + $0x90] sm:$0xff]
      %v195 = vld [vmem:[%s172 + $0x98] sm:$0xff]
      %v196 = vld [vmem:[%s172 + $0xa8] sm:$0xff]
      %v197 = vld [vmem:[%s172 + $0xb0] sm:$0xff]
      %v198 = vld [vmem:[%s172 + $0xc0] sm:$0xff]
      %v199 = vld [vmem:[%s172 + $0xc8] sm:$0xff]
      %v200 = vld [vmem:[%s172 + $0xd8] sm:$0xff]
      %v201 = vld [vmem:[%s172 + $0xe0] sm:$0xff]
      %v202 = vld [vmem:[%s172 + $0xf0] sm:$0xff]
      %v203 = vld [vmem:[%s172 + $0xf8] sm:$0xff]
      %v204 = vld [vmem:[%s172 + $0x108] sm:$0xff]
      %v205 = vld [vmem:[%s172 + $0x110] sm:$0xff]
      %v206 = vld [vmem:[%s172 + $0x120] sm:$0xff]
      %v207 = vld [vmem:[%s172 + $0x128] sm:$0xff]
      %v208 = vld [vmem:[%s172 + $0x138] sm:$0xff]
      %v209 = vld [vmem:[%s172 + $0x140] sm:$0xff]
      %v210 = vld [vmem:[%s172 + $0x150] sm:$0xff]
      %v211 = vld [vmem:[%s172 + $0x158] sm:$0xff]
      %v212 = vld [vmem:[%s172 + $0x168] sm:$0xff]
      %v213 = vld [vmem:[%s172 + $0x170] sm:$0xff]
      %vm214 = vcmask 31744
      %215 = vst.msk [vmem:[#allocation2] sm:$0xff] %vm214, %v182
      %216 = vst.msk [vmem:[#allocation2 + $0x8] sm:$0xff] %vm214, %v183
      %217 = vst.msk [vmem:[#allocation2 + $0x10] sm:$0xff] %vm214, %v184
      %218 = vst.msk [vmem:[#allocation2 + $0x18] sm:$0xff] %vm214, %v185
      %219 = vst.msk [vmem:[#allocation2 + $0x20] sm:$0xff] %vm214, %v186
      %220 = vst.msk [vmem:[#allocation2 + $0x28] sm:$0xff] %vm214, %v187
      %221 = vst.msk [vmem:[#allocation2 + $0x30] sm:$0xff] %vm214, %v188
      %222 = vst.msk [vmem:[#allocation2 + $0x38] sm:$0xff] %vm214, %v189
      %223 = vst.msk [vmem:[#allocation2 + $0x40] sm:$0xff] %vm214, %v190
      %224 = vst.msk [vmem:[#allocation2 + $0x48] sm:$0xff] %vm214, %v191
      %225 = vst.msk [vmem:[#allocation2 + $0x50] sm:$0xff] %vm214, %v192
      %226 = vst.msk [vmem:[#allocation2 + $0x58] sm:$0xff] %vm214, %v193
      %227 = vst.msk [vmem:[#allocation2 + $0x60] sm:$0xff] %vm214, %v194
      %228 = vst.msk [vmem:[#allocation2 + $0x68] sm:$0xff] %vm214, %v195
      %229 = vst.msk [vmem:[#allocation2 + $0x70] sm:$0xff] %vm214, %v196
      %230 = vst.msk [vmem:[#allocation2 + $0x78] sm:$0xff] %vm214, %v197
      %231 = vst.msk [vmem:[#allocation2 + $0x80] sm:$0xff] %vm214, %v198
      %232 = vst.msk [vmem:[#allocation2 + $0x88] sm:$0xff] %vm214, %v199
      %233 = vst.msk [vmem:[#allocation2 + $0x90] sm:$0xff] %vm214, %v200
      %234 = vst.msk [vmem:[#allocation2 + $0x98] sm:$0xff] %vm214, %v201
      %235 = vst.msk [vmem:[#allocation2 + $0xa0] sm:$0xff] %vm214, %v202
      %236 = vst.msk [vmem:[#allocation2 + $0xa8] sm:$0xff] %vm214, %v203
      %237 = vst.msk [vmem:[#allocation2 + $0xb0] sm:$0xff] %vm214, %v204
      %238 = vst.msk [vmem:[#allocation2 + $0xb8] sm:$0xff] %vm214, %v205
      %239 = vst.msk [vmem:[#allocation2 + $0xc0] sm:$0xff] %vm214, %v206
      %240 = vst.msk [vmem:[#allocation2 + $0xc8] sm:$0xff] %vm214, %v207
      %241 = vst.msk [vmem:[#allocation2 + $0xd0] sm:$0xff] %vm214, %v208
      %242 = vst.msk [vmem:[#allocation2 + $0xd8] sm:$0xff] %vm214, %v209
      %243 = vst.msk [vmem:[#allocation2 + $0xe0] sm:$0xff] %vm214, %v210
      %244 = vst.msk [vmem:[#allocation2 + $0xe8] sm:$0xff] %vm214, %v211
      %245 = vst.msk [vmem:[#allocation2 + $0xf0] sm:$0xff] %vm214, %v212
      %246 = vst.msk [vmem:[#allocation2 + $0xf8] sm:$0xff] %vm214, %v213
      %v247 = vld [vmem:[%s172 + $0x1] sm:$0xff]
      %v248 = vld [vmem:[%s172 + $0x9] sm:$0xff]
      %v249 = vld [vmem:[%s172 + $0x19] sm:$0xff]
      %v250 = vld [vmem:[%s172 + $0x21] sm:$0xff]
      %v251 = vld [vmem:[%s172 + $0x31] sm:$0xff]
      %v252 = vld [vmem:[%s172 + $0x39] sm:$0xff]
      %v253 = vld [vmem:[%s172 + $0x49] sm:$0xff]
      %v254 = vld [vmem:[%s172 + $0x51] sm:$0xff]
      %v255 = vld [vmem:[%s172 + $0x61] sm:$0xff]
      %v256 = vld [vmem:[%s172 + $0x69] sm:$0xff]
      %v257 = vld [vmem:[%s172 + $0x79] sm:$0xff]
      %v258 = vld [vmem:[%s172 + $0x81] sm:$0xff]
      %v259 = vld [vmem:[%s172 + $0x91] sm:$0xff]
      %v260 = vld [vmem:[%s172 + $0x99] sm:$0xff]
      %v261 = vld [vmem:[%s172 + $0xa9] sm:$0xff]
      %v262 = vld [vmem:[%s172 + $0xb1] sm:$0xff]
      %v263 = vld [vmem:[%s172 + $0xc1] sm:$0xff]
      %v264 = vld [vmem:[%s172 + $0xc9] sm:$0xff]
      %v265 = vld [vmem:[%s172 + $0xd9] sm:$0xff]
      %v266 = vld [vmem:[%s172 + $0xe1] sm:$0xff]
      %v267 = vld [vmem:[%s172 + $0xf1] sm:$0xff]
      %v268 = vld [vmem:[%s172 + $0xf9] sm:$0xff]
      %v269 = vld [vmem:[%s172 + $0x109] sm:$0xff]
      %v270 = vld [vmem:[%s172 + $0x111] sm:$0xff]
      %v271 = vld [vmem:[%s172 + $0x121] sm:$0xff]
      %v272 = vld [vmem:[%s172 + $0x129] sm:$0xff]
      %v273 = vld [vmem:[%s172 + $0x139] sm:$0xff]
      %v274 = vld [vmem:[%s172 + $0x141] sm:$0xff]
      %v275 = vld [vmem:[%s172 + $0x151] sm:$0xff]
      %v276 = vld [vmem:[%s172 + $0x159] sm:$0xff]
      %v277 = vld [vmem:[%s172 + $0x169] sm:$0xff]
      %v278 = vld [vmem:[%s172 + $0x171] sm:$0xff]
      %311 = vrot.lane.b32.xlu0 %v247, 4
      %v312 = vpop.permute.xlu0 %311
      %313 = vrot.lane.b32.xlu0 %v248, 4
      %v314 = vpop.permute.xlu0 %313
      %315 = vrot.lane.b32.xlu0 %v249, 4
      %v316 = vpop.permute.xlu0 %315
      %317 = vrot.lane.b32.xlu0 %v250, 4
      %v318 = vpop.permute.xlu0 %317
      %319 = vrot.lane.b32.xlu0 %v251, 4
      %v320 = vpop.permute.xlu0 %319
      %321 = vrot.lane.b32.xlu0 %v252, 4
      %v322 = vpop.permute.xlu0 %321
      %323 = vrot.lane.b32.xlu0 %v253, 4
      %v324 = vpop.permute.xlu0 %323
      %325 = vrot.lane.b32.xlu0 %v254, 4
      %v326 = vpop.permute.xlu0 %325
      %327 = vrot.lane.b32.xlu0 %v255, 4
      %v328 = vpop.permute.xlu0 %327
      %329 = vrot.lane.b32.xlu0 %v256, 4
      %v330 = vpop.permute.xlu0 %329
      %331 = vrot.lane.b32.xlu0 %v257, 4
      %v332 = vpop.permute.xlu0 %331
      %333 = vrot.lane.b32.xlu0 %v258, 4
      %v334 = vpop.permute.xlu0 %333
      %335 = vrot.lane.b32.xlu0 %v259, 4
      %v336 = vpop.permute.xlu0 %335
      %337 = vrot.lane.b32.xlu0 %v260, 4
      %v338 = vpop.permute.xlu0 %337
      %339 = vrot.lane.b32.xlu0 %v261, 4
      %v340 = vpop.permute.xlu0 %339
      %341 = vrot.lane.b32.xlu0 %v262, 4
      %v342 = vpop.permute.xlu0 %341
      %343 = vrot.lane.b32.xlu0 %v263, 4
      %v344 = vpop.permute.xlu0 %343
      %345 = vrot.lane.b32.xlu0 %v264, 4
      %v346 = vpop.permute.xlu0 %345
      %347 = vrot.lane.b32.xlu0 %v265, 4
      %v348 = vpop.permute.xlu0 %347
      %349 = vrot.lane.b32.xlu0 %v266, 4
      %v350 = vpop.permute.xlu0 %349
      %351 = vrot.lane.b32.xlu0 %v267, 4
      %v352 = vpop.permute.xlu0 %351
      %353 = vrot.lane.b32.xlu0 %v268, 4
      %v354 = vpop.permute.xlu0 %353
      %355 = vrot.lane.b32.xlu0 %v269, 4
      %v356 = vpop.permute.xlu0 %355
      %357 = vrot.lane.b32.xlu0 %v270, 4
      %v358 = vpop.permute.xlu0 %357
      %359 = vrot.lane.b32.xlu0 %v271, 4
      %v360 = vpop.permute.xlu0 %359
      %361 = vrot.lane.b32.xlu0 %v272, 4
      %v362 = vpop.permute.xlu0 %361
      %363 = vrot.lane.b32.xlu0 %v273, 4
      %v364 = vpop.permute.xlu0 %363
      %365 = vrot.lane.b32.xlu0 %v274, 4
      %v366 = vpop.permute.xlu0 %365
      %367 = vrot.lane.b32.xlu0 %v275, 4
      %v368 = vpop.permute.xlu0 %367
      %369 = vrot.lane.b32.xlu0 %v276, 4
      %v370 = vpop.permute.xlu0 %369
      %371 = vrot.lane.b32.xlu0 %v277, 4
      %v372 = vpop.permute.xlu0 %371
      %373 = vrot.lane.b32.xlu0 %v278, 4
      %v374 = vpop.permute.xlu0 %373
      %vm407 = vcmask 64544
      %408 = vst.msk [vmem:[#allocation2] sm:$0xff] %vm407, %v312
      %409 = vst.msk [vmem:[#allocation2 + $0x8] sm:$0xff] %vm407, %v314
      %410 = vst.msk [vmem:[#allocation2 + $0x10] sm:$0xff] %vm407, %v316
      %411 = vst.msk [vmem:[#allocation2 + $0x18] sm:$0xff] %vm407, %v318
      %412 = vst.msk [vmem:[#allocation2 + $0x20] sm:$0xff] %vm407, %v320
      %413 = vst.msk [vmem:[#allocation2 + $0x28] sm:$0xff] %vm407, %v322
      %414 = vst.msk [vmem:[#allocation2 + $0x30] sm:$0xff] %vm407, %v324
      %415 = vst.msk [vmem:[#allocation2 + $0x38] sm:$0xff] %vm407, %v326
      %416 = vst.msk [vmem:[#allocation2 + $0x40] sm:$0xff] %vm407, %v328
      %417 = vst.msk [vmem:[#allocation2 + $0x48] sm:$0xff] %vm407, %v330
      %418 = vst.msk [vmem:[#allocation2 + $0x50] sm:$0xff] %vm407, %v332
      %419 = vst.msk [vmem:[#allocation2 + $0x58] sm:$0xff] %vm407, %v334
      %420 = vst.msk [vmem:[#allocation2 + $0x60] sm:$0xff] %vm407, %v336
      %421 = vst.msk [vmem:[#allocation2 + $0x68] sm:$0xff] %vm407, %v338
      %422 = vst.msk [vmem:[#allocation2 + $0x70] sm:$0xff] %vm407, %v340
      %423 = vst.msk [vmem:[#allocation2 + $0x78] sm:$0xff] %vm407, %v342
      %424 = vst.msk [vmem:[#allocation2 + $0x80] sm:$0xff] %vm407, %v344
      %425 = vst.msk [vmem:[#allocation2 + $0x88] sm:$0xff] %vm407, %v346
      %426 = vst.msk [vmem:[#allocation2 + $0x90] sm:$0xff] %vm407, %v348
      %427 = vst.msk [vmem:[#allocation2 + $0x98] sm:$0xff] %vm407, %v350
      %428 = vst.msk [vmem:[#allocation2 + $0xa0] sm:$0xff] %vm407, %v352
      %429 = vst.msk [vmem:[#allocation2 + $0xa8] sm:$0xff] %vm407, %v354
      %430 = vst.msk [vmem:[#allocation2 + $0xb0] sm:$0xff] %vm407, %v356
      %431 = vst.msk [vmem:[#allocation2 + $0xb8] sm:$0xff] %vm407, %v358
      %432 = vst.msk [vmem:[#allocation2 + $0xc0] sm:$0xff] %vm407, %v360
      %433 = vst.msk [vmem:[#allocation2 + $0xc8] sm:$0xff] %vm407, %v362
      %434 = vst.msk [vmem:[#allocation2 + $0xd0] sm:$0xff] %vm407, %v364
      %435 = vst.msk [vmem:[#allocation2 + $0xd8] sm:$0xff] %vm407, %v366
      %436 = vst.msk [vmem:[#allocation2 + $0xe0] sm:$0xff] %vm407, %v368
      %437 = vst.msk [vmem:[#allocation2 + $0xe8] sm:$0xff] %vm407, %v370
      %438 = vst.msk [vmem:[#allocation2 + $0xf0] sm:$0xff] %vm407, %v372
      %439 = vst.msk [vmem:[#allocation2 + $0xf8] sm:$0xff] %vm407, %v374
      %v440 = vld [vmem:[%s172 + $0x2] sm:$0xff]
      %v441 = vld [vmem:[%s172 + $0xa] sm:$0xff]
      %v442 = vld [vmem:[%s172 + $0x1a] sm:$0xff]
      %v443 = vld [vmem:[%s172 + $0x22] sm:$0xff]
      %v444 = vld [vmem:[%s172 + $0x32] sm:$0xff]
      %v445 = vld [vmem:[%s172 + $0x3a] sm:$0xff]
      %v446 = vld [vmem:[%s172 + $0x4a] sm:$0xff]
      %v447 = vld [vmem:[%s172 + $0x52] sm:$0xff]
      %v448 = vld [vmem:[%s172 + $0x62] sm:$0xff]
      %v449 = vld [vmem:[%s172 + $0x6a] sm:$0xff]
      %v450 = vld [vmem:[%s172 + $0x7a] sm:$0xff]
      %v451 = vld [vmem:[%s172 + $0x82] sm:$0xff]
      %v452 = vld [vmem:[%s172 + $0x92] sm:$0xff]
      %v453 = vld [vmem:[%s172 + $0x9a] sm:$0xff]
      %v454 = vld [vmem:[%s172 + $0xaa] sm:$0xff]
      %v455 = vld [vmem:[%s172 + $0xb2] sm:$0xff]
      %v456 = vld [vmem:[%s172 + $0xc2] sm:$0xff]
      %v457 = vld [vmem:[%s172 + $0xca] sm:$0xff]
      %v458 = vld [vmem:[%s172 + $0xda] sm:$0xff]
      %v459 = vld [vmem:[%s172 + $0xe2] sm:$0xff]
      %v460 = vld [vmem:[%s172 + $0xf2] sm:$0xff]
      %v461 = vld [vmem:[%s172 + $0xfa] sm:$0xff]
      %v462 = vld [vmem:[%s172 + $0x10a] sm:$0xff]
      %v463 = vld [vmem:[%s172 + $0x112] sm:$0xff]
      %v464 = vld [vmem:[%s172 + $0x122] sm:$0xff]
      %v465 = vld [vmem:[%s172 + $0x12a] sm:$0xff]
      %v466 = vld [vmem:[%s172 + $0x13a] sm:$0xff]
      %v467 = vld [vmem:[%s172 + $0x142] sm:$0xff]
      %v468 = vld [vmem:[%s172 + $0x152] sm:$0xff]
      %v469 = vld [vmem:[%s172 + $0x15a] sm:$0xff]
      %v470 = vld [vmem:[%s172 + $0x16a] sm:$0xff]
      %v471 = vld [vmem:[%s172 + $0x172] sm:$0xff]
      %504 = vrot.lane.b32.xlu0 %v440, 8
      %v505 = vpop.permute.xlu0 %504
      %506 = vrot.lane.b32.xlu0 %v441, 8
      %v507 = vpop.permute.xlu0 %506
      %508 = vrot.lane.b32.xlu0 %v442, 8
      %v509 = vpop.permute.xlu0 %508
      %510 = vrot.lane.b32.xlu0 %v443, 8
      %v511 = vpop.permute.xlu0 %510
      %512 = vrot.lane.b32.xlu0 %v444, 8
      %v513 = vpop.permute.xlu0 %512
      %514 = vrot.lane.b32.xlu0 %v445, 8
      %v515 = vpop.permute.xlu0 %514
      %516 = vrot.lane.b32.xlu0 %v446, 8
      %v517 = vpop.permute.xlu0 %516
      %518 = vrot.lane.b32.xlu0 %v447, 8
      %v519 = vpop.permute.xlu0 %518
      %520 = vrot.lane.b32.xlu0 %v448, 8
      %v521 = vpop.permute.xlu0 %520
      %522 = vrot.lane.b32.xlu0 %v449, 8
      %v523 = vpop.permute.xlu0 %522
      %524 = vrot.lane.b32.xlu0 %v450, 8
      %v525 = vpop.permute.xlu0 %524
      %526 = vrot.lane.b32.xlu0 %v451, 8
      %v527 = vpop.permute.xlu0 %526
      %528 = vrot.lane.b32.xlu0 %v452, 8
      %v529 = vpop.permute.xlu0 %528
      %530 = vrot.lane.b32.xlu0 %v453, 8
      %v531 = vpop.permute.xlu0 %530
      %532 = vrot.lane.b32.xlu0 %v454, 8
      %v533 = vpop.permute.xlu0 %532
      %534 = vrot.lane.b32.xlu0 %v455, 8
      %v535 = vpop.permute.xlu0 %534
      %536 = vrot.lane.b32.xlu0 %v456, 8
      %v537 = vpop.permute.xlu0 %536
      %538 = vrot.lane.b32.xlu0 %v457, 8
      %v539 = vpop.permute.xlu0 %538
      %540 = vrot.lane.b32.xlu0 %v458, 8
      %v541 = vpop.permute.xlu0 %540
      %542 = vrot.lane.b32.xlu0 %v459, 8
      %v543 = vpop.permute.xlu0 %542
      %544 = vrot.lane.b32.xlu0 %v460, 8
      %v545 = vpop.permute.xlu0 %544
      %546 = vrot.lane.b32.xlu0 %v461, 8
      %v547 = vpop.permute.xlu0 %546
      %548 = vrot.lane.b32.xlu0 %v462, 8
      %v549 = vpop.permute.xlu0 %548
      %550 = vrot.lane.b32.xlu0 %v463, 8
      %v551 = vpop.permute.xlu0 %550
      %552 = vrot.lane.b32.xlu0 %v464, 8
      %v553 = vpop.permute.xlu0 %552
      %554 = vrot.lane.b32.xlu0 %v465, 8
      %v555 = vpop.permute.xlu0 %554
      %556 = vrot.lane.b32.xlu0 %v466, 8
      %v557 = vpop.permute.xlu0 %556
      %558 = vrot.lane.b32.xlu0 %v467, 8
      %v559 = vpop.permute.xlu0 %558
      %560 = vrot.lane.b32.xlu0 %v468, 8
      %v561 = vpop.permute.xlu0 %560
      %562 = vrot.lane.b32.xlu0 %v469, 8
      %v563 = vpop.permute.xlu0 %562
      %564 = vrot.lane.b32.xlu0 %v470, 8
      %v565 = vpop.permute.xlu0 %564
      %566 = vrot.lane.b32.xlu0 %v471, 8
      %v567 = vpop.permute.xlu0 %566
      %vm600 = vcmask 97344
      %601 = vst.msk [vmem:[#allocation2] sm:$0xff] %vm600, %v505
      %602 = vst.msk [vmem:[#allocation2 + $0x8] sm:$0xff] %vm600, %v507
      %603 = vst.msk [vmem:[#allocation2 + $0x10] sm:$0xff] %vm600, %v509
      %604 = vst.msk [vmem:[#allocation2 + $0x18] sm:$0xff] %vm600, %v511
      %605 = vst.msk [vmem:[#allocation2 + $0x20] sm:$0xff] %vm600, %v513
      %606 = vst.msk [vmem:[#allocation2 + $0x28] sm:$0xff] %vm600, %v515
      %607 = vst.msk [vmem:[#allocation2 + $0x30] sm:$0xff] %vm600, %v517
      %608 = vst.msk [vmem:[#allocation2 + $0x38] sm:$0xff] %vm600, %v519
      %609 = vst.msk [vmem:[#allocation2 + $0x40] sm:$0xff] %vm600, %v521
      %610 = vst.msk [vmem:[#allocation2 + $0x48] sm:$0xff] %vm600, %v523
      %611 = vst.msk [vmem:[#allocation2 + $0x50] sm:$0xff] %vm600, %v525
      %612 = vst.msk [vmem:[#allocation2 + $0x58] sm:$0xff] %vm600, %v527
      %613 = vst.msk [vmem:[#allocation2 + $0x60] sm:$0xff] %vm600, %v529
      %614 = vst.msk [vmem:[#allocation2 + $0x68] sm:$0xff] %vm600, %v531
      %615 = vst.msk [vmem:[#allocation2 + $0x70] sm:$0xff] %vm600, %v533
      %616 = vst.msk [vmem:[#allocation2 + $0x78] sm:$0xff] %vm600, %v535
      %617 = vst.msk [vmem:[#allocation2 + $0x80] sm:$0xff] %vm600, %v537
      %618 = vst.msk [vmem:[#allocation2 + $0x88] sm:$0xff] %vm600, %v539
      %619 = vst.msk [vmem:[#allocation2 + $0x90] sm:$0xff] %vm600, %v541
      %620 = vst.msk [vmem:[#allocation2 + $0x98] sm:$0xff] %vm600, %v543
      %621 = vst.msk [vmem:[#allocation2 + $0xa0] sm:$0xff] %vm600, %v545
      %622 = vst.msk [vmem:[#allocation2 + $0xa8] sm:$0xff] %vm600, %v547
      %623 = vst.msk [vmem:[#allocation2 + $0xb0] sm:$0xff] %vm600, %v549
      %624 = vst.msk [vmem:[#allocation2 + $0xb8] sm:$0xff] %vm600, %v551
      %625 = vst.msk [vmem:[#allocation2 + $0xc0] sm:$0xff] %vm600, %v553
      %626 = vst.msk [vmem:[#allocation2 + $0xc8] sm:$0xff] %vm600, %v555
      %627 = vst.msk [vmem:[#allocation2 + $0xd0] sm:$0xff] %vm600, %v557
      %628 = vst.msk [vmem:[#allocation2 + $0xd8] sm:$0xff] %vm600, %v559
      %629 = vst.msk [vmem:[#allocation2 + $0xe0] sm:$0xff] %vm600, %v561
      %630 = vst.msk [vmem:[#allocation2 + $0xe8] sm:$0xff] %vm600, %v563
      %631 = vst.msk [vmem:[#allocation2 + $0xf0] sm:$0xff] %vm600, %v565
      %632 = vst.msk [vmem:[#allocation2 + $0xf8] sm:$0xff] %vm600, %v567
      %s633 = scalar_lea.vmem %s172, 24
      %v634 = vld [vmem:[%s633] sm:$0xff]
      %v635 = vld [vmem:[%s633 + $0x8] sm:$0xff]
      %v636 = vld [vmem:[%s633 + $0x18] sm:$0xff]
      %v637 = vld [vmem:[%s633 + $0x20] sm:$0xff]
      %v638 = vld [vmem:[%s633 + $0x30] sm:$0xff]
      %v639 = vld [vmem:[%s633 + $0x38] sm:$0xff]
      %v640 = vld [vmem:[%s633 + $0x48] sm:$0xff]
      %v641 = vld [vmem:[%s633 + $0x50] sm:$0xff]
      %v642 = vld [vmem:[%s633 + $0x60] sm:$0xff]
      %v643 = vld [vmem:[%s633 + $0x68] sm:$0xff]
      %v644 = vld [vmem:[%s633 + $0x78] sm:$0xff]
      %v645 = vld [vmem:[%s633 + $0x80] sm:$0xff]
      %v646 = vld [vmem:[%s633 + $0x90] sm:$0xff]
      %v647 = vld [vmem:[%s633 + $0x98] sm:$0xff]
      %v648 = vld [vmem:[%s633 + $0xa8] sm:$0xff]
      %v649 = vld [vmem:[%s633 + $0xb0] sm:$0xff]
      %v650 = vld [vmem:[%s633 + $0xc0] sm:$0xff]
      %v651 = vld [vmem:[%s633 + $0xc8] sm:$0xff]
      %v652 = vld [vmem:[%s633 + $0xd8] sm:$0xff]
      %v653 = vld [vmem:[%s633 + $0xe0] sm:$0xff]
      %v654 = vld [vmem:[%s633 + $0xf0] sm:$0xff]
      %v655 = vld [vmem:[%s633 + $0xf8] sm:$0xff]
      %v656 = vld [vmem:[%s633 + $0x108] sm:$0xff]
      %v657 = vld [vmem:[%s633 + $0x110] sm:$0xff]
      %v658 = vld [vmem:[%s633 + $0x120] sm:$0xff]
      %v659 = vld [vmem:[%s633 + $0x128] sm:$0xff]
      %v660 = vld [vmem:[%s633 + $0x138] sm:$0xff]
      %v661 = vld [vmem:[%s633 + $0x140] sm:$0xff]
      %v662 = vld [vmem:[%s633 + $0x150] sm:$0xff]
      %v663 = vld [vmem:[%s633 + $0x158] sm:$0xff]
      %v664 = vld [vmem:[%s633 + $0x168] sm:$0xff]
      %v665 = vld [vmem:[%s633 + $0x170] sm:$0xff]
      %698 = vrot.lane.b32.xlu0 %v634, 12
      %v699 = vpop.permute.xlu0 %698
      %700 = vrot.lane.b32.xlu0 %v635, 12
      %v701 = vpop.permute.xlu0 %700
      %702 = vrot.lane.b32.xlu0 %v636, 12
      %v703 = vpop.permute.xlu0 %702
      %704 = vrot.lane.b32.xlu0 %v637, 12
      %v705 = vpop.permute.xlu0 %704
      %706 = vrot.lane.b32.xlu0 %v638, 12
      %v707 = vpop.permute.xlu0 %706
      %708 = vrot.lane.b32.xlu0 %v639, 12
      %v709 = vpop.permute.xlu0 %708
      %710 = vrot.lane.b32.xlu0 %v640, 12
      %v711 = vpop.permute.xlu0 %710
      %712 = vrot.lane.b32.xlu0 %v641, 12
      %v713 = vpop.permute.xlu0 %712
      %714 = vrot.lane.b32.xlu0 %v642, 12
      %v715 = vpop.permute.xlu0 %714
      %716 = vrot.lane.b32.xlu0 %v643, 12
      %v717 = vpop.permute.xlu0 %716
      %718 = vrot.lane.b32.xlu0 %v644, 12
      %v719 = vpop.permute.xlu0 %718
      %720 = vrot.lane.b32.xlu0 %v645, 12
      %v721 = vpop.permute.xlu0 %720
      %722 = vrot.lane.b32.xlu0 %v646, 12
      %v723 = vpop.permute.xlu0 %722
      %724 = vrot.lane.b32.xlu0 %v647, 12
      %v725 = vpop.permute.xlu0 %724
      %726 = vrot.lane.b32.xlu0 %v648, 12
      %v727 = vpop.permute.xlu0 %726
      %728 = vrot.lane.b32.xlu0 %v649, 12
      %v729 = vpop.permute.xlu0 %728
      %730 = vrot.lane.b32.xlu0 %v650, 12
      %v731 = vpop.permute.xlu0 %730
      %732 = vrot.lane.b32.xlu0 %v651, 12
      %v733 = vpop.permute.xlu0 %732
      %734 = vrot.lane.b32.xlu0 %v652, 12
      %v735 = vpop.permute.xlu0 %734
      %736 = vrot.lane.b32.xlu0 %v653, 12
      %v737 = vpop.permute.xlu0 %736
      %738 = vrot.lane.b32.xlu0 %v654, 12
      %v739 = vpop.permute.xlu0 %738
      %740 = vrot.lane.b32.xlu0 %v655, 12
      %v741 = vpop.permute.xlu0 %740
      %742 = vrot.lane.b32.xlu0 %v656, 12
      %v743 = vpop.permute.xlu0 %742
      %744 = vrot.lane.b32.xlu0 %v657, 12
      %v745 = vpop.permute.xlu0 %744
      %746 = vrot.lane.b32.xlu0 %v658, 12
      %v747 = vpop.permute.xlu0 %746
      %748 = vrot.lane.b32.xlu0 %v659, 12
      %v749 = vpop.permute.xlu0 %748
      %750 = vrot.lane.b32.xlu0 %v660, 12
      %v751 = vpop.permute.xlu0 %750
      %752 = vrot.lane.b32.xlu0 %v661, 12
      %v753 = vpop.permute.xlu0 %752
      %754 = vrot.lane.b32.xlu0 %v662, 12
      %v755 = vpop.permute.xlu0 %754
      %756 = vrot.lane.b32.xlu0 %v663, 12
      %v757 = vpop.permute.xlu0 %756
      %758 = vrot.lane.b32.xlu0 %v664, 12
      %v759 = vpop.permute.xlu0 %758
      %760 = vrot.lane.b32.xlu0 %v665, 12
      %v761 = vpop.permute.xlu0 %760
      %vm794 = vcmask 130144
      %795 = vst.msk [vmem:[#allocation2] sm:$0xff] %vm794, %v699
      %796 = vst.msk [vmem:[#allocation2 + $0x8] sm:$0xff] %vm794, %v701
      %797 = vst.msk [vmem:[#allocation2 + $0x10] sm:$0xff] %vm794, %v703
      %798 = vst.msk [vmem:[#allocation2 + $0x18] sm:$0xff] %vm794, %v705
      %799 = vst.msk [vmem:[#allocation2 + $0x20] sm:$0xff] %vm794, %v707
      %800 = vst.msk [vmem:[#allocation2 + $0x28] sm:$0xff] %vm794, %v709
      %801 = vst.msk [vmem:[#allocation2 + $0x30] sm:$0xff] %vm794, %v711
      %802 = vst.msk [vmem:[#allocation2 + $0x38] sm:$0xff] %vm794, %v713
      %803 = vst.msk [vmem:[#allocation2 + $0x40] sm:$0xff] %vm794, %v715
      %804 = vst.msk [vmem:[#allocation2 + $0x48] sm:$0xff] %vm794, %v717
      %805 = vst.msk [vmem:[#allocation2 + $0x50] sm:$0xff] %vm794, %v719
      %806 = vst.msk [vmem:[#allocation2 + $0x58] sm:$0xff] %vm794, %v721
      %807 = vst.msk [vmem:[#allocation2 + $0x60] sm:$0xff] %vm794, %v723
      %808 = vst.msk [vmem:[#allocation2 + $0x68] sm:$0xff] %vm794, %v725
      %809 = vst.msk [vmem:[#allocation2 + $0x70] sm:$0xff] %vm794, %v727
      %810 = vst.msk [vmem:[#allocation2 + $0x78] sm:$0xff] %vm794, %v729
      %811 = vst.msk [vmem:[#allocation2 + $0x80] sm:$0xff] %vm794, %v731
      %812 = vst.msk [vmem:[#allocation2 + $0x88] sm:$0xff] %vm794, %v733
      %813 = vst.msk [vmem:[#allocation2 + $0x90] sm:$0xff] %vm794, %v735
      %814 = vst.msk [vmem:[#allocation2 + $0x98] sm:$0xff] %vm794, %v737
      %815 = vst.msk [vmem:[#allocation2 + $0xa0] sm:$0xff] %vm794, %v739
      %816 = vst.msk [vmem:[#allocation2 + $0xa8] sm:$0xff] %vm794, %v741
      %817 = vst.msk [vmem:[#allocation2 + $0xb0] sm:$0xff] %vm794, %v743
      %818 = vst.msk [vmem:[#allocation2 + $0xb8] sm:$0xff] %vm794, %v745
      %819 = vst.msk [vmem:[#allocation2 + $0xc0] sm:$0xff] %vm794, %v747
      %820 = vst.msk [vmem:[#allocation2 + $0xc8] sm:$0xff] %vm794, %v749
      %821 = vst.msk [vmem:[#allocation2 + $0xd0] sm:$0xff] %vm794, %v751
      %822 = vst.msk [vmem:[#allocation2 + $0xd8] sm:$0xff] %vm794, %v753
      %823 = vst.msk [vmem:[#allocation2 + $0xe0] sm:$0xff] %vm794, %v755
      %824 = vst.msk [vmem:[#allocation2 + $0xe8] sm:$0xff] %vm794, %v757
      %825 = vst.msk [vmem:[#allocation2 + $0xf0] sm:$0xff] %vm794, %v759
      %826 = vst.msk [vmem:[#allocation2 + $0xf8] sm:$0xff] %vm794, %v761
      %v827 = vld [vmem:[%s633 + $0x1] sm:$0xff]
      %v828 = vld [vmem:[%s633 + $0x9] sm:$0xff]
      %v829 = vld [vmem:[%s633 + $0x19] sm:$0xff]
      %v830 = vld [vmem:[%s633 + $0x21] sm:$0xff]
      %v831 = vld [vmem:[%s633 + $0x31] sm:$0xff]
      %v832 = vld [vmem:[%s633 + $0x39] sm:$0xff]
      %v833 = vld [vmem:[%s633 + $0x49] sm:$0xff]
      %v834 = vld [vmem:[%s633 + $0x51] sm:$0xff]
      %v835 = vld [vmem:[%s633 + $0x61] sm:$0xff]
      %v836 = vld [vmem:[%s633 + $0x69] sm:$0xff]
      %v837 = vld [vmem:[%s633 + $0x79] sm:$0xff]
      %v838 = vld [vmem:[%s633 + $0x81] sm:$0xff]
      %v839 = vld [vmem:[%s633 + $0x91] sm:$0xff]
      %v840 = vld [vmem:[%s633 + $0x99] sm:$0xff]
      %v841 = vld [vmem:[%s633 + $0xa9] sm:$0xff]
      %v842 = vld [vmem:[%s633 + $0xb1] sm:$0xff]
      %v843 = vld [vmem:[%s633 + $0xc1] sm:$0xff]
      %v844 = vld [vmem:[%s633 + $0xc9] sm:$0xff]
      %v845 = vld [vmem:[%s633 + $0xd9] sm:$0xff]
      %v846 = vld [vmem:[%s633 + $0xe1] sm:$0xff]
      %v847 = vld [vmem:[%s633 + $0xf1] sm:$0xff]
      %v848 = vld [vmem:[%s633 + $0xf9] sm:$0xff]
      %v849 = vld [vmem:[%s633 + $0x109] sm:$0xff]
      %v850 = vld [vmem:[%s633 + $0x111] sm:$0xff]
      %v851 = vld [vmem:[%s633 + $0x121] sm:$0xff]
      %v852 = vld [vmem:[%s633 + $0x129] sm:$0xff]
      %v853 = vld [vmem:[%s633 + $0x139] sm:$0xff]
      %v854 = vld [vmem:[%s633 + $0x141] sm:$0xff]
      %v855 = vld [vmem:[%s633 + $0x151] sm:$0xff]
      %v856 = vld [vmem:[%s633 + $0x159] sm:$0xff]
      %v857 = vld [vmem:[%s633 + $0x169] sm:$0xff]
      %v858 = vld [vmem:[%s633 + $0x171] sm:$0xff]
      %891 = vrot.lane.b32.xlu0 %v827, 16
      %v892 = vpop.permute.xlu0 %891
      %893 = vrot.lane.b32.xlu0 %v828, 16
      %v894 = vpop.permute.xlu0 %893
      %895 = vrot.lane.b32.xlu0 %v829, 16
      %v896 = vpop.permute.xlu0 %895
      %897 = vrot.lane.b32.xlu0 %v830, 16
      %v898 = vpop.permute.xlu0 %897
      %899 = vrot.lane.b32.xlu0 %v831, 16
      %v900 = vpop.permute.xlu0 %899
      %901 = vrot.lane.b32.xlu0 %v832, 16
      %v902 = vpop.permute.xlu0 %901
      %903 = vrot.lane.b32.xlu0 %v833, 16
      %v904 = vpop.permute.xlu0 %903
      %905 = vrot.lane.b32.xlu0 %v834, 16
      %v906 = vpop.permute.xlu0 %905
      %907 = vrot.lane.b32.xlu0 %v835, 16
      %v908 = vpop.permute.xlu0 %907
      %909 = vrot.lane.b32.xlu0 %v836, 16
      %v910 = vpop.permute.xlu0 %909
      %911 = vrot.lane.b32.xlu0 %v837, 16
      %v912 = vpop.permute.xlu0 %911
      %913 = vrot.lane.b32.xlu0 %v838, 16
      %v914 = vpop.permute.xlu0 %913
      %915 = vrot.lane.b32.xlu0 %v839, 16
      %v916 = vpop.permute.xlu0 %915
      %917 = vrot.lane.b32.xlu0 %v840, 16
      %v918 = vpop.permute.xlu0 %917
      %919 = vrot.lane.b32.xlu0 %v841, 16
      %v920 = vpop.permute.xlu0 %919
      %921 = vrot.lane.b32.xlu0 %v842, 16
      %v922 = vpop.permute.xlu0 %921
      %923 = vrot.lane.b32.xlu0 %v843, 16
      %v924 = vpop.permute.xlu0 %923
      %925 = vrot.lane.b32.xlu0 %v844, 16
      %v926 = vpop.permute.xlu0 %925
      %927 = vrot.lane.b32.xlu0 %v845, 16
      %v928 = vpop.permute.xlu0 %927
      %929 = vrot.lane.b32.xlu0 %v846, 16
      %v930 = vpop.permute.xlu0 %929
      %931 = vrot.lane.b32.xlu0 %v847, 16
      %v932 = vpop.permute.xlu0 %931
      %933 = vrot.lane.b32.xlu0 %v848, 16
      %v934 = vpop.permute.xlu0 %933
      %935 = vrot.lane.b32.xlu0 %v849, 16
      %v936 = vpop.permute.xlu0 %935
      %937 = vrot.lane.b32.xlu0 %v850, 16
      %v938 = vpop.permute.xlu0 %937
      %939 = vrot.lane.b32.xlu0 %v851, 16
      %v940 = vpop.permute.xlu0 %939
      %941 = vrot.lane.b32.xlu0 %v852, 16
      %v942 = vpop.permute.xlu0 %941
      %943 = vrot.lane.b32.xlu0 %v853, 16
      %v944 = vpop.permute.xlu0 %943
      %945 = vrot.lane.b32.xlu0 %v854, 16
      %v946 = vpop.permute.xlu0 %945
      %947 = vrot.lane.b32.xlu0 %v855, 16
      %v948 = vpop.permute.xlu0 %947
      %949 = vrot.lane.b32.xlu0 %v856, 16
      %v950 = vpop.permute.xlu0 %949
      %951 = vrot.lane.b32.xlu0 %v857, 16
      %v952 = vpop.permute.xlu0 %951
      %953 = vrot.lane.b32.xlu0 %v858, 16
      %v954 = vpop.permute.xlu0 %953
      %vm987 = vcmask 162944
      %988 = vst.msk [vmem:[#allocation2] sm:$0xff] %vm987, %v892
      %989 = vst.msk [vmem:[#allocation2 + $0x8] sm:$0xff] %vm987, %v894
      %990 = vst.msk [vmem:[#allocation2 + $0x10] sm:$0xff] %vm987, %v896
      %991 = vst.msk [vmem:[#allocation2 + $0x18] sm:$0xff] %vm987, %v898
      %992 = vst.msk [vmem:[#allocation2 + $0x20] sm:$0xff] %vm987, %v900
      %993 = vst.msk [vmem:[#allocation2 + $0x28] sm:$0xff] %vm987, %v902
      %994 = vst.msk [vmem:[#allocation2 + $0x30] sm:$0xff] %vm987, %v904
      %995 = vst.msk [vmem:[#allocation2 + $0x38] sm:$0xff] %vm987, %v906
      %996 = vst.msk [vmem:[#allocation2 + $0x40] sm:$0xff] %vm987, %v908
      %997 = vst.msk [vmem:[#allocation2 + $0x48] sm:$0xff] %vm987, %v910
      %998 = vst.msk [vmem:[#allocation2 + $0x50] sm:$0xff] %vm987, %v912
      %999 = vst.msk [vmem:[#allocation2 + $0x58] sm:$0xff] %vm987, %v914
      %1000 = vst.msk [vmem:[#allocation2 + $0x60] sm:$0xff] %vm987, %v916
      %1001 = vst.msk [vmem:[#allocation2 + $0x68] sm:$0xff] %vm987, %v918
      %1002 = vst.msk [vmem:[#allocation2 + $0x70] sm:$0xff] %vm987, %v920
      %1003 = vst.msk [vmem:[#allocation2 + $0x78] sm:$0xff] %vm987, %v922
      %1004 = vst.msk [vmem:[#allocation2 + $0x80] sm:$0xff] %vm987, %v924
      %1005 = vst.msk [vmem:[#allocation2 + $0x88] sm:$0xff] %vm987, %v926
      %1006 = vst.msk [vmem:[#allocation2 + $0x90] sm:$0xff] %vm987, %v928
      %1007 = vst.msk [vmem:[#allocation2 + $0x98] sm:$0xff] %vm987, %v930
      %1008 = vst.msk [vmem:[#allocation2 + $0xa0] sm:$0xff] %vm987, %v932
      %1009 = vst.msk [vmem:[#allocation2 + $0xa8] sm:$0xff] %vm987, %v934
      %1010 = vst.msk [vmem:[#allocation2 + $0xb0] sm:$0xff] %vm987, %v936
      %1011 = vst.msk [vmem:[#allocation2 + $0xb8] sm:$0xff] %vm987, %v938
      %1012 = vst.msk [vmem:[#allocation2 + $0xc0] sm:$0xff] %vm987, %v940
      %1013 = vst.msk [vmem:[#allocation2 + $0xc8] sm:$0xff] %vm987, %v942
      %1014 = vst.msk [vmem:[#allocation2 + $0xd0] sm:$0xff] %vm987, %v944
      %1015 = vst.msk [vmem:[#allocation2 + $0xd8] sm:$0xff] %vm987, %v946
      %1016 = vst.msk [vmem:[#allocation2 + $0xe0] sm:$0xff] %vm987, %v948
      %1017 = vst.msk [vmem:[#allocation2 + $0xe8] sm:$0xff] %vm987, %v950
      %1018 = vst.msk [vmem:[#allocation2 + $0xf0] sm:$0xff] %vm987, %v952
      %1019 = vst.msk [vmem:[#allocation2 + $0xf8] sm:$0xff] %vm987, %v954
      %v1020 = vld [vmem:[%s633 + $0x2] sm:$0xff]
      %v1021 = vld [vmem:[%s633 + $0xa] sm:$0xff]
      %v1022 = vld [vmem:[%s633 + $0x1a] sm:$0xff]
      %v1023 = vld [vmem:[%s633 + $0x22] sm:$0xff]
      %v1024 = vld [vmem:[%s633 + $0x32] sm:$0xff]
      %v1025 = vld [vmem:[%s633 + $0x3a] sm:$0xff]
      %v1026 = vld [vmem:[%s633 + $0x4a] sm:$0xff]
      %v1027 = vld [vmem:[%s633 + $0x52] sm:$0xff]
      %v1028 = vld [vmem:[%s633 + $0x62] sm:$0xff]
      %v1029 = vld [vmem:[%s633 + $0x6a] sm:$0xff]
      %v1030 = vld [vmem:[%s633 + $0x7a] sm:$0xff]
      %v1031 = vld [vmem:[%s633 + $0x82] sm:$0xff]
      %v1032 = vld [vmem:[%s633 + $0x92] sm:$0xff]
      %v1033 = vld [vmem:[%s633 + $0x9a] sm:$0xff]
      %v1034 = vld [vmem:[%s633 + $0xaa] sm:$0xff]
      %v1035 = vld [vmem:[%s633 + $0xb2] sm:$0xff]
      %v1036 = vld [vmem:[%s633 + $0xc2] sm:$0xff]
      %v1037 = vld [vmem:[%s633 + $0xca] sm:$0xff]
      %v1038 = vld [vmem:[%s633 + $0xda] sm:$0xff]
      %v1039 = vld [vmem:[%s633 + $0xe2] sm:$0xff]
      %v1040 = vld [vmem:[%s633 + $0xf2] sm:$0xff]
      %v1041 = vld [vmem:[%s633 + $0xfa] sm:$0xff]
      %v1042 = vld [vmem:[%s633 + $0x10a] sm:$0xff]
      %v1043 = vld [vmem:[%s633 + $0x112] sm:$0xff]
      %v1044 = vld [vmem:[%s633 + $0x122] sm:$0xff]
      %v1045 = vld [vmem:[%s633 + $0x12a] sm:$0xff]
      %v1046 = vld [vmem:[%s633 + $0x13a] sm:$0xff]
      %v1047 = vld [vmem:[%s633 + $0x142] sm:$0xff]
      %v1048 = vld [vmem:[%s633 + $0x152] sm:$0xff]
      %v1049 = vld [vmem:[%s633 + $0x15a] sm:$0xff]
      %v1050 = vld [vmem:[%s633 + $0x16a] sm:$0xff]
      %v1051 = vld [vmem:[%s633 + $0x172] sm:$0xff]
      %1084 = vrot.lane.b32.xlu0 %v1020, 20
      %v1085 = vpop.permute.xlu0 %1084
      %1086 = vrot.lane.b32.xlu0 %v1021, 20
      %v1087 = vpop.permute.xlu0 %1086
      %1088 = vrot.lane.b32.xlu0 %v1022, 20
      %v1089 = vpop.permute.xlu0 %1088
      %1090 = vrot.lane.b32.xlu0 %v1023, 20
      %v1091 = vpop.permute.xlu0 %1090
      %1092 = vrot.lane.b32.xlu0 %v1024, 20
      %v1093 = vpop.permute.xlu0 %1092
      %1094 = vrot.lane.b32.xlu0 %v1025, 20
      %v1095 = vpop.permute.xlu0 %1094
      %1096 = vrot.lane.b32.xlu0 %v1026, 20
      %v1097 = vpop.permute.xlu0 %1096
      %1098 = vrot.lane.b32.xlu0 %v1027, 20
      %v1099 = vpop.permute.xlu0 %1098
      %1100 = vrot.lane.b32.xlu0 %v1028, 20
      %v1101 = vpop.permute.xlu0 %1100
      %1102 = vrot.lane.b32.xlu0 %v1029, 20
      %v1103 = vpop.permute.xlu0 %1102
      %1104 = vrot.lane.b32.xlu0 %v1030, 20
      %v1105 = vpop.permute.xlu0 %1104
      %1106 = vrot.lane.b32.xlu0 %v1031, 20
      %v1107 = vpop.permute.xlu0 %1106
      %1108 = vrot.lane.b32.xlu0 %v1032, 20
      %v1109 = vpop.permute.xlu0 %1108
      %1110 = vrot.lane.b32.xlu0 %v1033, 20
      %v1111 = vpop.permute.xlu0 %1110
      %1112 = vrot.lane.b32.xlu0 %v1034, 20
      %v1113 = vpop.permute.xlu0 %1112
      %1114 = vrot.lane.b32.xlu0 %v1035, 20
      %v1115 = vpop.permute.xlu0 %1114
      %1116 = vrot.lane.b32.xlu0 %v1036, 20
      %v1117 = vpop.permute.xlu0 %1116
      %1118 = vrot.lane.b32.xlu0 %v1037, 20
      %v1119 = vpop.permute.xlu0 %1118
      %1120 = vrot.lane.b32.xlu0 %v1038, 20
      %v1121 = vpop.permute.xlu0 %1120
      %1122 = vrot.lane.b32.xlu0 %v1039, 20
      %v1123 = vpop.permute.xlu0 %1122
      %1124 = vrot.lane.b32.xlu0 %v1040, 20
      %v1125 = vpop.permute.xlu0 %1124
      %1126 = vrot.lane.b32.xlu0 %v1041, 20
      %v1127 = vpop.permute.xlu0 %1126
      %1128 = vrot.lane.b32.xlu0 %v1042, 20
      %v1129 = vpop.permute.xlu0 %1128
      %1130 = vrot.lane.b32.xlu0 %v1043, 20
      %v1131 = vpop.permute.xlu0 %1130
      %1132 = vrot.lane.b32.xlu0 %v1044, 20
      %v1133 = vpop.permute.xlu0 %1132
      %1134 = vrot.lane.b32.xlu0 %v1045, 20
      %v1135 = vpop.permute.xlu0 %1134
      %1136 = vrot.lane.b32.xlu0 %v1046, 20
      %v1137 = vpop.permute.xlu0 %1136
      %1138 = vrot.lane.b32.xlu0 %v1047, 20
      %v1139 = vpop.permute.xlu0 %1138
      %1140 = vrot.lane.b32.xlu0 %v1048, 20
      %v1141 = vpop.permute.xlu0 %1140
      %1142 = vrot.lane.b32.xlu0 %v1049, 20
      %v1143 = vpop.permute.xlu0 %1142
      %1144 = vrot.lane.b32.xlu0 %v1050, 20
      %v1145 = vpop.permute.xlu0 %1144
      %1146 = vrot.lane.b32.xlu0 %v1051, 20
      %v1147 = vpop.permute.xlu0 %1146
      %vm1180 = vcmask 195744
      %1181 = vst.msk [vmem:[#allocation2] sm:$0xff] %vm1180, %v1085
      %1182 = vst.msk [vmem:[#allocation2 + $0x8] sm:$0xff] %vm1180, %v1087
      %1183 = vst.msk [vmem:[#allocation2 + $0x10] sm:$0xff] %vm1180, %v1089
      %1184 = vst.msk [vmem:[#allocation2 + $0x18] sm:$0xff] %vm1180, %v1091
      %1185 = vst.msk [vmem:[#allocation2 + $0x20] sm:$0xff] %vm1180, %v1093
      %1186 = vst.msk [vmem:[#allocation2 + $0x28] sm:$0xff] %vm1180, %v1095
      %1187 = vst.msk [vmem:[#allocation2 + $0x30] sm:$0xff] %vm1180, %v1097
      %1188 = vst.msk [vmem:[#allocation2 + $0x38] sm:$0xff] %vm1180, %v1099
      %1189 = vst.msk [vmem:[#allocation2 + $0x40] sm:$0xff] %vm1180, %v1101
      %1190 = vst.msk [vmem:[#allocation2 + $0x48] sm:$0xff] %vm1180, %v1103
      %1191 = vst.msk [vmem:[#allocation2 + $0x50] sm:$0xff] %vm1180, %v1105
      %1192 = vst.msk [vmem:[#allocation2 + $0x58] sm:$0xff] %vm1180, %v1107
      %1193 = vst.msk [vmem:[#allocation2 + $0x60] sm:$0xff] %vm1180, %v1109
      %1194 = vst.msk [vmem:[#allocation2 + $0x68] sm:$0xff] %vm1180, %v1111
      %1195 = vst.msk [vmem:[#allocation2 + $0x70] sm:$0xff] %vm1180, %v1113
      %1196 = vst.msk [vmem:[#allocation2 + $0x78] sm:$0xff] %vm1180, %v1115
      %1197 = vst.msk [vmem:[#allocation2 + $0x80] sm:$0xff] %vm1180, %v1117
      %1198 = vst.msk [vmem:[#allocation2 + $0x88] sm:$0xff] %vm1180, %v1119
      %1199 = vst.msk [vmem:[#allocation2 + $0x90] sm:$0xff] %vm1180, %v1121
      %1200 = vst.msk [vmem:[#allocation2 + $0x98] sm:$0xff] %vm1180, %v1123
      %1201 = vst.msk [vmem:[#allocation2 + $0xa0] sm:$0xff] %vm1180, %v1125
      %1202 = vst.msk [vmem:[#allocation2 + $0xa8] sm:$0xff] %vm1180, %v1127
      %1203 = vst.msk [vmem:[#allocation2 + $0xb0] sm:$0xff] %vm1180, %v1129
      %1204 = vst.msk [vmem:[#allocation2 + $0xb8] sm:$0xff] %vm1180, %v1131
      %1205 = vst.msk [vmem:[#allocation2 + $0xc0] sm:$0xff] %vm1180, %v1133
      %1206 = vst.msk [vmem:[#allocation2 + $0xc8] sm:$0xff] %vm1180, %v1135
      %1207 = vst.msk [vmem:[#allocation2 + $0xd0] sm:$0xff] %vm1180, %v1137
      %1208 = vst.msk [vmem:[#allocation2 + $0xd8] sm:$0xff] %vm1180, %v1139
      %1209 = vst.msk [vmem:[#allocation2 + $0xe0] sm:$0xff] %vm1180, %v1141
      %1210 = vst.msk [vmem:[#allocation2 + $0xe8] sm:$0xff] %vm1180, %v1143
      %1211 = vst.msk [vmem:[#allocation2 + $0xf0] sm:$0xff] %vm1180, %v1145
      %1212 = vst.msk [vmem:[#allocation2 + $0xf8] sm:$0xff] %vm1180, %v1147
      %s1213 = scalar_lea.vmem %s172, 48
      %v1214 = vld [vmem:[%s1213] sm:$0xff]
      %v1215 = vld [vmem:[%s1213 + $0x8] sm:$0xff]
      %v1216 = vld [vmem:[%s1213 + $0x18] sm:$0xff]
      %v1217 = vld [vmem:[%s1213 + $0x20] sm:$0xff]
      %v1218 = vld [vmem:[%s1213 + $0x30] sm:$0xff]
      %v1219 = vld [vmem:[%s1213 + $0x38] sm:$0xff]
      %v1220 = vld [vmem:[%s1213 + $0x48] sm:$0xff]
      %v1221 = vld [vmem:[%s1213 + $0x50] sm:$0xff]
      %v1222 = vld [vmem:[%s1213 + $0x60] sm:$0xff]
      %v1223 = vld [vmem:[%s1213 + $0x68] sm:$0xff]
      %v1224 = vld [vmem:[%s1213 + $0x78] sm:$0xff]
      %v1225 = vld [vmem:[%s1213 + $0x80] sm:$0xff]
      %v1226 = vld [vmem:[%s1213 + $0x90] sm:$0xff]
      %v1227 = vld [vmem:[%s1213 + $0x98] sm:$0xff]
      %v1228 = vld [vmem:[%s1213 + $0xa8] sm:$0xff]
      %v1229 = vld [vmem:[%s1213 + $0xb0] sm:$0xff]
      %v1230 = vld [vmem:[%s1213 + $0xc0] sm:$0xff]
      %v1231 = vld [vmem:[%s1213 + $0xc8] sm:$0xff]
      %v1232 = vld [vmem:[%s1213 + $0xd8] sm:$0xff]
      %v1233 = vld [vmem:[%s1213 + $0xe0] sm:$0xff]
      %v1234 = vld [vmem:[%s1213 + $0xf0] sm:$0xff]
      %v1235 = vld [vmem:[%s1213 + $0xf8] sm:$0xff]
      %v1236 = vld [vmem:[%s1213 + $0x108] sm:$0xff]
      %v1237 = vld [vmem:[%s1213 + $0x110] sm:$0xff]
      %v1238 = vld [vmem:[%s1213 + $0x120] sm:$0xff]
      %v1239 = vld [vmem:[%s1213 + $0x128] sm:$0xff]
      %v1240 = vld [vmem:[%s1213 + $0x138] sm:$0xff]
      %v1241 = vld [vmem:[%s1213 + $0x140] sm:$0xff]
      %v1242 = vld [vmem:[%s1213 + $0x150] sm:$0xff]
      %v1243 = vld [vmem:[%s1213 + $0x158] sm:$0xff]
      %v1244 = vld [vmem:[%s1213 + $0x168] sm:$0xff]
      %v1245 = vld [vmem:[%s1213 + $0x170] sm:$0xff]
      %1278 = vrot.lane.b32.xlu0 %v1214, 24
      %v1279 = vpop.permute.xlu0 %1278
      %1280 = vrot.lane.b32.xlu0 %v1215, 24
      %v1281 = vpop.permute.xlu0 %1280
      %1282 = vrot.lane.b32.xlu0 %v1216, 24
      %v1283 = vpop.permute.xlu0 %1282
      %1284 = vrot.lane.b32.xlu0 %v1217, 24
      %v1285 = vpop.permute.xlu0 %1284
      %1286 = vrot.lane.b32.xlu0 %v1218, 24
      %v1287 = vpop.permute.xlu0 %1286
      %1288 = vrot.lane.b32.xlu0 %v1219, 24
      %v1289 = vpop.permute.xlu0 %1288
      %1290 = vrot.lane.b32.xlu0 %v1220, 24
      %v1291 = vpop.permute.xlu0 %1290
      %1292 = vrot.lane.b32.xlu0 %v1221, 24
      %v1293 = vpop.permute.xlu0 %1292
      %1294 = vrot.lane.b32.xlu0 %v1222, 24
      %v1295 = vpop.permute.xlu0 %1294
      %1296 = vrot.lane.b32.xlu0 %v1223, 24
      %v1297 = vpop.permute.xlu0 %1296
      %1298 = vrot.lane.b32.xlu0 %v1224, 24
      %v1299 = vpop.permute.xlu0 %1298
      %1300 = vrot.lane.b32.xlu0 %v1225, 24
      %v1301 = vpop.permute.xlu0 %1300
      %1302 = vrot.lane.b32.xlu0 %v1226, 24
      %v1303 = vpop.permute.xlu0 %1302
      %1304 = vrot.lane.b32.xlu0 %v1227, 24
      %v1305 = vpop.permute.xlu0 %1304
      %1306 = vrot.lane.b32.xlu0 %v1228, 24
      %v1307 = vpop.permute.xlu0 %1306
      %1308 = vrot.lane.b32.xlu0 %v1229, 24
      %v1309 = vpop.permute.xlu0 %1308
      %1310 = vrot.lane.b32.xlu0 %v1230, 24
      %v1311 = vpop.permute.xlu0 %1310
      %1312 = vrot.lane.b32.xlu0 %v1231, 24
      %v1313 = vpop.permute.xlu0 %1312
      %1314 = vrot.lane.b32.xlu0 %v1232, 24
      %v1315 = vpop.permute.xlu0 %1314
      %1316 = vrot.lane.b32.xlu0 %v1233, 24
      %v1317 = vpop.permute.xlu0 %1316
      %1318 = vrot.lane.b32.xlu0 %v1234, 24
      %v1319 = vpop.permute.xlu0 %1318
      %1320 = vrot.lane.b32.xlu0 %v1235, 24
      %v1321 = vpop.permute.xlu0 %1320
      %1322 = vrot.lane.b32.xlu0 %v1236, 24
      %v1323 = vpop.permute.xlu0 %1322
      %1324 = vrot.lane.b32.xlu0 %v1237, 24
      %v1325 = vpop.permute.xlu0 %1324
      %1326 = vrot.lane.b32.xlu0 %v1238, 24
      %v1327 = vpop.permute.xlu0 %1326
      %1328 = vrot.lane.b32.xlu0 %v1239, 24
      %v1329 = vpop.permute.xlu0 %1328
      %1330 = vrot.lane.b32.xlu0 %v1240, 24
      %v1331 = vpop.permute.xlu0 %1330
      %1332 = vrot.lane.b32.xlu0 %v1241, 24
      %v1333 = vpop.permute.xlu0 %1332
      %1334 = vrot.lane.b32.xlu0 %v1242, 24
      %v1335 = vpop.permute.xlu0 %1334
      %1336 = vrot.lane.b32.xlu0 %v1243, 24
      %v1337 = vpop.permute.xlu0 %1336
      %1338 = vrot.lane.b32.xlu0 %v1244, 24
      %v1339 = vpop.permute.xlu0 %1338
      %1340 = vrot.lane.b32.xlu0 %v1245, 24
      %v1341 = vpop.permute.xlu0 %1340
      %vm1374 = vcmask 228544
      %1375 = vst.msk [vmem:[#allocation2] sm:$0xff] %vm1374, %v1279
      %1376 = vst.msk [vmem:[#allocation2 + $0x8] sm:$0xff] %vm1374, %v1281
      %1377 = vst.msk [vmem:[#allocation2 + $0x10] sm:$0xff] %vm1374, %v1283
      %1378 = vst.msk [vmem:[#allocation2 + $0x18] sm:$0xff] %vm1374, %v1285
      %1379 = vst.msk [vmem:[#allocation2 + $0x20] sm:$0xff] %vm1374, %v1287
      %1380 = vst.msk [vmem:[#allocation2 + $0x28] sm:$0xff] %vm1374, %v1289
      %1381 = vst.msk [vmem:[#allocation2 + $0x30] sm:$0xff] %vm1374, %v1291
      %1382 = vst.msk [vmem:[#allocation2 + $0x38] sm:$0xff] %vm1374, %v1293
      %1383 = vst.msk [vmem:[#allocation2 + $0x40] sm:$0xff] %vm1374, %v1295
      %1384 = vst.msk [vmem:[#allocation2 + $0x48] sm:$0xff] %vm1374, %v1297
      %1385 = vst.msk [vmem:[#allocation2 + $0x50] sm:$0xff] %vm1374, %v1299
      %1386 = vst.msk [vmem:[#allocation2 + $0x58] sm:$0xff] %vm1374, %v1301
      %1387 = vst.msk [vmem:[#allocation2 + $0x60] sm:$0xff] %vm1374, %v1303
      %1388 = vst.msk [vmem:[#allocation2 + $0x68] sm:$0xff] %vm1374, %v1305
      %1389 = vst.msk [vmem:[#allocation2 + $0x70] sm:$0xff] %vm1374, %v1307
      %1390 = vst.msk [vmem:[#allocation2 + $0x78] sm:$0xff] %vm1374, %v1309
      %1391 = vst.msk [vmem:[#allocation2 + $0x80] sm:$0xff] %vm1374, %v1311
      %1392 = vst.msk [vmem:[#allocation2 + $0x88] sm:$0xff] %vm1374, %v1313
      %1393 = vst.msk [vmem:[#allocation2 + $0x90] sm:$0xff] %vm1374, %v1315
      %1394 = vst.msk [vmem:[#allocation2 + $0x98] sm:$0xff] %vm1374, %v1317
      %1395 = vst.msk [vmem:[#allocation2 + $0xa0] sm:$0xff] %vm1374, %v1319
      %1396 = vst.msk [vmem:[#allocation2 + $0xa8] sm:$0xff] %vm1374, %v1321
      %1397 = vst.msk [vmem:[#allocation2 + $0xb0] sm:$0xff] %vm1374, %v1323
      %1398 = vst.msk [vmem:[#allocation2 + $0xb8] sm:$0xff] %vm1374, %v1325
      %1399 = vst.msk [vmem:[#allocation2 + $0xc0] sm:$0xff] %vm1374, %v1327
      %1400 = vst.msk [vmem:[#allocation2 + $0xc8] sm:$0xff] %vm1374, %v1329
      %1401 = vst.msk [vmem:[#allocation2 + $0xd0] sm:$0xff] %vm1374, %v1331
      %1402 = vst.msk [vmem:[#allocation2 + $0xd8] sm:$0xff] %vm1374, %v1333
      %1403 = vst.msk [vmem:[#allocation2 + $0xe0] sm:$0xff] %vm1374, %v1335
      %1404 = vst.msk [vmem:[#allocation2 + $0xe8] sm:$0xff] %vm1374, %v1337
      %1405 = vst.msk [vmem:[#allocation2 + $0xf0] sm:$0xff] %vm1374, %v1339
      %1406 = vst.msk [vmem:[#allocation2 + $0xf8] sm:$0xff] %vm1374, %v1341
      %v1407 = vld [vmem:[%s1213 + $0x1] sm:$0xff]
      %v1408 = vld [vmem:[%s1213 + $0x9] sm:$0xff]
      %v1409 = vld [vmem:[%s1213 + $0x19] sm:$0xff]
      %v1410 = vld [vmem:[%s1213 + $0x21] sm:$0xff]
      %v1411 = vld [vmem:[%s1213 + $0x31] sm:$0xff]
      %v1412 = vld [vmem:[%s1213 + $0x39] sm:$0xff]
      %v1413 = vld [vmem:[%s1213 + $0x49] sm:$0xff]
      %v1414 = vld [vmem:[%s1213 + $0x51] sm:$0xff]
      %v1415 = vld [vmem:[%s1213 + $0x61] sm:$0xff]
      %v1416 = vld [vmem:[%s1213 + $0x69] sm:$0xff]
      %v1417 = vld [vmem:[%s1213 + $0x79] sm:$0xff]
      %v1418 = vld [vmem:[%s1213 + $0x81] sm:$0xff]
      %v1419 = vld [vmem:[%s1213 + $0x91] sm:$0xff]
      %v1420 = vld [vmem:[%s1213 + $0x99] sm:$0xff]
      %v1421 = vld [vmem:[%s1213 + $0xa9] sm:$0xff]
      %v1422 = vld [vmem:[%s1213 + $0xb1] sm:$0xff]
      %v1423 = vld [vmem:[%s1213 + $0xc1] sm:$0xff]
      %v1424 = vld [vmem:[%s1213 + $0xc9] sm:$0xff]
      %v1425 = vld [vmem:[%s1213 + $0xd9] sm:$0xff]
      %v1426 = vld [vmem:[%s1213 + $0xe1] sm:$0xff]
      %v1427 = vld [vmem:[%s1213 + $0xf1] sm:$0xff]
      %v1428 = vld [vmem:[%s1213 + $0xf9] sm:$0xff]
      %v1429 = vld [vmem:[%s1213 + $0x109] sm:$0xff]
      %v1430 = vld [vmem:[%s1213 + $0x111] sm:$0xff]
      %v1431 = vld [vmem:[%s1213 + $0x121] sm:$0xff]
      %v1432 = vld [vmem:[%s1213 + $0x129] sm:$0xff]
      %v1433 = vld [vmem:[%s1213 + $0x139] sm:$0xff]
      %v1434 = vld [vmem:[%s1213 + $0x141] sm:$0xff]
      %v1435 = vld [vmem:[%s1213 + $0x151] sm:$0xff]
      %v1436 = vld [vmem:[%s1213 + $0x159] sm:$0xff]
      %v1437 = vld [vmem:[%s1213 + $0x169] sm:$0xff]
      %v1438 = vld [vmem:[%s1213 + $0x171] sm:$0xff]
      %1471 = vrot.lane.b32.xlu0 %v1407, 28
      %v1472 = vpop.permute.xlu0 %1471
      %1473 = vrot.lane.b32.xlu0 %v1408, 28
      %v1474 = vpop.permute.xlu0 %1473
      %1475 = vrot.lane.b32.xlu0 %v1409, 28
      %v1476 = vpop.permute.xlu0 %1475
      %1477 = vrot.lane.b32.xlu0 %v1410, 28
      %v1478 = vpop.permute.xlu0 %1477
      %1479 = vrot.lane.b32.xlu0 %v1411, 28
      %v1480 = vpop.permute.xlu0 %1479
      %1481 = vrot.lane.b32.xlu0 %v1412, 28
      %v1482 = vpop.permute.xlu0 %1481
      %1483 = vrot.lane.b32.xlu0 %v1413, 28
      %v1484 = vpop.permute.xlu0 %1483
      %1485 = vrot.lane.b32.xlu0 %v1414, 28
      %v1486 = vpop.permute.xlu0 %1485
      %1487 = vrot.lane.b32.xlu0 %v1415, 28
      %v1488 = vpop.permute.xlu0 %1487
      %1489 = vrot.lane.b32.xlu0 %v1416, 28
      %v1490 = vpop.permute.xlu0 %1489
      %1491 = vrot.lane.b32.xlu0 %v1417, 28
      %v1492 = vpop.permute.xlu0 %1491
      %1493 = vrot.lane.b32.xlu0 %v1418, 28
      %v1494 = vpop.permute.xlu0 %1493
      %1495 = vrot.lane.b32.xlu0 %v1419, 28
      %v1496 = vpop.permute.xlu0 %1495
      %1497 = vrot.lane.b32.xlu0 %v1420, 28
      %v1498 = vpop.permute.xlu0 %1497
      %1499 = vrot.lane.b32.xlu0 %v1421, 28
      %v1500 = vpop.permute.xlu0 %1499
      %1501 = vrot.lane.b32.xlu0 %v1422, 28
      %v1502 = vpop.permute.xlu0 %1501
      %1503 = vrot.lane.b32.xlu0 %v1423, 28
      %v1504 = vpop.permute.xlu0 %1503
      %1505 = vrot.lane.b32.xlu0 %v1424, 28
      %v1506 = vpop.permute.xlu0 %1505
      %1507 = vrot.lane.b32.xlu0 %v1425, 28
      %v1508 = vpop.permute.xlu0 %1507
      %1509 = vrot.lane.b32.xlu0 %v1426, 28
      %v1510 = vpop.permute.xlu0 %1509
      %1511 = vrot.lane.b32.xlu0 %v1427, 28
      %v1512 = vpop.permute.xlu0 %1511
      %1513 = vrot.lane.b32.xlu0 %v1428, 28
      %v1514 = vpop.permute.xlu0 %1513
      %1515 = vrot.lane.b32.xlu0 %v1429, 28
      %v1516 = vpop.permute.xlu0 %1515
      %1517 = vrot.lane.b32.xlu0 %v1430, 28
      %v1518 = vpop.permute.xlu0 %1517
      %1519 = vrot.lane.b32.xlu0 %v1431, 28
      %v1520 = vpop.permute.xlu0 %1519
      %1521 = vrot.lane.b32.xlu0 %v1432, 28
      %v1522 = vpop.permute.xlu0 %1521
      %1523 = vrot.lane.b32.xlu0 %v1433, 28
      %v1524 = vpop.permute.xlu0 %1523
      %1525 = vrot.lane.b32.xlu0 %v1434, 28
      %v1526 = vpop.permute.xlu0 %1525
      %1527 = vrot.lane.b32.xlu0 %v1435, 28
      %v1528 = vpop.permute.xlu0 %1527
      %1529 = vrot.lane.b32.xlu0 %v1436, 28
      %v1530 = vpop.permute.xlu0 %1529
      %1531 = vrot.lane.b32.xlu0 %v1437, 28
      %v1532 = vpop.permute.xlu0 %1531
      %1533 = vrot.lane.b32.xlu0 %v1438, 28
      %v1534 = vpop.permute.xlu0 %1533
      %vm1567 = vcmask 261344
      %1568 = vst.msk [vmem:[#allocation2] sm:$0xff] %vm1567, %v1472
      %1569 = vst.msk [vmem:[#allocation2 + $0x8] sm:$0xff] %vm1567, %v1474
      %1570 = vst.msk [vmem:[#allocation2 + $0x10] sm:$0xff] %vm1567, %v1476
      %1571 = vst.msk [vmem:[#allocation2 + $0x18] sm:$0xff] %vm1567, %v1478
      %1572 = vst.msk [vmem:[#allocation2 + $0x20] sm:$0xff] %vm1567, %v1480
      %1573 = vst.msk [vmem:[#allocation2 + $0x28] sm:$0xff] %vm1567, %v1482
      %1574 = vst.msk [vmem:[#allocation2 + $0x30] sm:$0xff] %vm1567, %v1484
      %1575 = vst.msk [vmem:[#allocation2 + $0x38] sm:$0xff] %vm1567, %v1486
      %1576 = vst.msk [vmem:[#allocation2 + $0x40] sm:$0xff] %vm1567, %v1488
      %1577 = vst.msk [vmem:[#allocation2 + $0x48] sm:$0xff] %vm1567, %v1490
      %1578 = vst.msk [vmem:[#allocation2 + $0x50] sm:$0xff] %vm1567, %v1492
      %1579 = vst.msk [vmem:[#allocation2 + $0x58] sm:$0xff] %vm1567, %v1494
      %1580 = vst.msk [vmem:[#allocation2 + $0x60] sm:$0xff] %vm1567, %v1496
      %1581 = vst.msk [vmem:[#allocation2 + $0x68] sm:$0xff] %vm1567, %v1498
      %1582 = vst.msk [vmem:[#allocation2 + $0x70] sm:$0xff] %vm1567, %v1500
      %1583 = vst.msk [vmem:[#allocation2 + $0x78] sm:$0xff] %vm1567, %v1502
      %1584 = vst.msk [vmem:[#allocation2 + $0x80] sm:$0xff] %vm1567, %v1504
      %1585 = vst.msk [vmem:[#allocation2 + $0x88] sm:$0xff] %vm1567, %v1506
      %1586 = vst.msk [vmem:[#allocation2 + $0x90] sm:$0xff] %vm1567, %v1508
      %1587 = vst.msk [vmem:[#allocation2 + $0x98] sm:$0xff] %vm1567, %v1510
      %1588 = vst.msk [vmem:[#allocation2 + $0xa0] sm:$0xff] %vm1567, %v1512
      %1589 = vst.msk [vmem:[#allocation2 + $0xa8] sm:$0xff] %vm1567, %v1514
      %1590 = vst.msk [vmem:[#allocation2 + $0xb0] sm:$0xff] %vm1567, %v1516
      %1591 = vst.msk [vmem:[#allocation2 + $0xb8] sm:$0xff] %vm1567, %v1518
      %1592 = vst.msk [vmem:[#allocation2 + $0xc0] sm:$0xff] %vm1567, %v1520
      %1593 = vst.msk [vmem:[#allocation2 + $0xc8] sm:$0xff] %vm1567, %v1522
      %1594 = vst.msk [vmem:[#allocation2 + $0xd0] sm:$0xff] %vm1567, %v1524
      %1595 = vst.msk [vmem:[#allocation2 + $0xd8] sm:$0xff] %vm1567, %v1526
      %1596 = vst.msk [vmem:[#allocation2 + $0xe0] sm:$0xff] %vm1567, %v1528
      %1597 = vst.msk [vmem:[#allocation2 + $0xe8] sm:$0xff] %vm1567, %v1530
      %1598 = vst.msk [vmem:[#allocation2 + $0xf0] sm:$0xff] %vm1567, %v1532
      %1599 = vst.msk [vmem:[#allocation2 + $0xf8] sm:$0xff] %vm1567, %v1534
      %v1600 = vld [vmem:[%s1213 + $0x2] sm:$0xff]
      %v1601 = vld [vmem:[%s1213 + $0xa] sm:$0xff]
      %v1602 = vld [vmem:[%s1213 + $0x1a] sm:$0xff]
      %v1603 = vld [vmem:[%s1213 + $0x22] sm:$0xff]
      %v1604 = vld [vmem:[%s1213 + $0x32] sm:$0xff]
      %v1605 = vld [vmem:[%s1213 + $0x3a] sm:$0xff]
      %v1606 = vld [vmem:[%s1213 + $0x4a] sm:$0xff]
      %v1607 = vld [vmem:[%s1213 + $0x52] sm:$0xff]
      %v1608 = vld [vmem:[%s1213 + $0x62] sm:$0xff]
      %v1609 = vld [vmem:[%s1213 + $0x6a] sm:$0xff]
      %v1610 = vld [vmem:[%s1213 + $0x7a] sm:$0xff]
      %v1611 = vld [vmem:[%s1213 + $0x82] sm:$0xff]
      %v1612 = vld [vmem:[%s1213 + $0x92] sm:$0xff]
      %v1613 = vld [vmem:[%s1213 + $0x9a] sm:$0xff]
      %v1614 = vld [vmem:[%s1213 + $0xaa] sm:$0xff]
      %v1615 = vld [vmem:[%s1213 + $0xb2] sm:$0xff]
      %v1616 = vld [vmem:[%s1213 + $0xc2] sm:$0xff]
      %v1617 = vld [vmem:[%s1213 + $0xca] sm:$0xff]
      %v1618 = vld [vmem:[%s1213 + $0xda] sm:$0xff]
      %v1619 = vld [vmem:[%s1213 + $0xe2] sm:$0xff]
      %v1620 = vld [vmem:[%s1213 + $0xf2] sm:$0xff]
      %v1621 = vld [vmem:[%s1213 + $0xfa] sm:$0xff]
      %v1622 = vld [vmem:[%s1213 + $0x10a] sm:$0xff]
      %v1623 = vld [vmem:[%s1213 + $0x112] sm:$0xff]
      %v1624 = vld [vmem:[%s1213 + $0x122] sm:$0xff]
      %v1625 = vld [vmem:[%s1213 + $0x12a] sm:$0xff]
      %v1626 = vld [vmem:[%s1213 + $0x13a] sm:$0xff]
      %v1627 = vld [vmem:[%s1213 + $0x142] sm:$0xff]
      %v1628 = vld [vmem:[%s1213 + $0x152] sm:$0xff]
      %v1629 = vld [vmem:[%s1213 + $0x15a] sm:$0xff]
      %v1630 = vld [vmem:[%s1213 + $0x16a] sm:$0xff]
      %v1631 = vld [vmem:[%s1213 + $0x172] sm:$0xff]
      %1664 = vrot.lane.b32.xlu0 %v1600, 32
      %v1665 = vpop.permute.xlu0 %1664
      %1666 = vrot.lane.b32.xlu0 %v1601, 32
      %v1667 = vpop.permute.xlu0 %1666
      %1668 = vrot.lane.b32.xlu0 %v1602, 32
      %v1669 = vpop.permute.xlu0 %1668
      %1670 = vrot.lane.b32.xlu0 %v1603, 32
      %v1671 = vpop.permute.xlu0 %1670
      %1672 = vrot.lane.b32.xlu0 %v1604, 32
      %v1673 = vpop.permute.xlu0 %1672
      %1674 = vrot.lane.b32.xlu0 %v1605, 32
      %v1675 = vpop.permute.xlu0 %1674
      %1676 = vrot.lane.b32.xlu0 %v1606, 32
      %v1677 = vpop.permute.xlu0 %1676
      %1678 = vrot.lane.b32.xlu0 %v1607, 32
      %v1679 = vpop.permute.xlu0 %1678
      %1680 = vrot.lane.b32.xlu0 %v1608, 32
      %v1681 = vpop.permute.xlu0 %1680
      %1682 = vrot.lane.b32.xlu0 %v1609, 32
      %v1683 = vpop.permute.xlu0 %1682
      %1684 = vrot.lane.b32.xlu0 %v1610, 32
      %v1685 = vpop.permute.xlu0 %1684
      %1686 = vrot.lane.b32.xlu0 %v1611, 32
      %v1687 = vpop.permute.xlu0 %1686
      %1688 = vrot.lane.b32.xlu0 %v1612, 32
      %v1689 = vpop.permute.xlu0 %1688
      %1690 = vrot.lane.b32.xlu0 %v1613, 32
      %v1691 = vpop.permute.xlu0 %1690
      %1692 = vrot.lane.b32.xlu0 %v1614, 32
      %v1693 = vpop.permute.xlu0 %1692
      %1694 = vrot.lane.b32.xlu0 %v1615, 32
      %v1695 = vpop.permute.xlu0 %1694
      %1696 = vrot.lane.b32.xlu0 %v1616, 32
      %v1697 = vpop.permute.xlu0 %1696
      %1698 = vrot.lane.b32.xlu0 %v1617, 32
      %v1699 = vpop.permute.xlu0 %1698
      %1700 = vrot.lane.b32.xlu0 %v1618, 32
      %v1701 = vpop.permute.xlu0 %1700
      %1702 = vrot.lane.b32.xlu0 %v1619, 32
      %v1703 = vpop.permute.xlu0 %1702
      %1704 = vrot.lane.b32.xlu0 %v1620, 32
      %v1705 = vpop.permute.xlu0 %1704
      %1706 = vrot.lane.b32.xlu0 %v1621, 32
      %v1707 = vpop.permute.xlu0 %1706
      %1708 = vrot.lane.b32.xlu0 %v1622, 32
      %v1709 = vpop.permute.xlu0 %1708
      %1710 = vrot.lane.b32.xlu0 %v1623, 32
      %v1711 = vpop.permute.xlu0 %1710
      %1712 = vrot.lane.b32.xlu0 %v1624, 32
      %v1713 = vpop.permute.xlu0 %1712
      %1714 = vrot.lane.b32.xlu0 %v1625, 32
      %v1715 = vpop.permute.xlu0 %1714
      %1716 = vrot.lane.b32.xlu0 %v1626, 32
      %v1717 = vpop.permute.xlu0 %1716
      %1718 = vrot.lane.b32.xlu0 %v1627, 32
      %v1719 = vpop.permute.xlu0 %1718
      %1720 = vrot.lane.b32.xlu0 %v1628, 32
      %v1721 = vpop.permute.xlu0 %1720
      %1722 = vrot.lane.b32.xlu0 %v1629, 32
      %v1723 = vpop.permute.xlu0 %1722
      %1724 = vrot.lane.b32.xlu0 %v1630, 32
      %v1725 = vpop.permute.xlu0 %1724
      %1726 = vrot.lane.b32.xlu0 %v1631, 32
      %v1727 = vpop.permute.xlu0 %1726
      %vm1760 = vcmask 294144
      %1761 = vst.msk [vmem:[#allocation2] sm:$0xff] %vm1760, %v1665
      %1762 = vst.msk [vmem:[#allocation2 + $0x8] sm:$0xff] %vm1760, %v1667
      %1763 = vst.msk [vmem:[#allocation2 + $0x10] sm:$0xff] %vm1760, %v1669
      %1764 = vst.msk [vmem:[#allocation2 + $0x18] sm:$0xff] %vm1760, %v1671
      %1765 = vst.msk [vmem:[#allocation2 + $0x20] sm:$0xff] %vm1760, %v1673
      %1766 = vst.msk [vmem:[#allocation2 + $0x28] sm:$0xff] %vm1760, %v1675
      %1767 = vst.msk [vmem:[#allocation2 + $0x30] sm:$0xff] %vm1760, %v1677
      %1768 = vst.msk [vmem:[#allocation2 + $0x38] sm:$0xff] %vm1760, %v1679
      %1769 = vst.msk [vmem:[#allocation2 + $0x40] sm:$0xff] %vm1760, %v1681
      %1770 = vst.msk [vmem:[#allocation2 + $0x48] sm:$0xff] %vm1760, %v1683
      %1771 = vst.msk [vmem:[#allocation2 + $0x50] sm:$0xff] %vm1760, %v1685
      %1772 = vst.msk [vmem:[#allocation2 + $0x58] sm:$0xff] %vm1760, %v1687
      %1773 = vst.msk [vmem:[#allocation2 + $0x60] sm:$0xff] %vm1760, %v1689
      %1774 = vst.msk [vmem:[#allocation2 + $0x68] sm:$0xff] %vm1760, %v1691
      %1775 = vst.msk [vmem:[#allocation2 + $0x70] sm:$0xff] %vm1760, %v1693
      %1776 = vst.msk [vmem:[#allocation2 + $0x78] sm:$0xff] %vm1760, %v1695
      %1777 = vst.msk [vmem:[#allocation2 + $0x80] sm:$0xff] %vm1760, %v1697
      %1778 = vst.msk [vmem:[#allocation2 + $0x88] sm:$0xff] %vm1760, %v1699
      %1779 = vst.msk [vmem:[#allocation2 + $0x90] sm:$0xff] %vm1760, %v1701
      %1780 = vst.msk [vmem:[#allocation2 + $0x98] sm:$0xff] %vm1760, %v1703
      %1781 = vst.msk [vmem:[#allocation2 + $0xa0] sm:$0xff] %vm1760, %v1705
      %1782 = vst.msk [vmem:[#allocation2 + $0xa8] sm:$0xff] %vm1760, %v1707
      %1783 = vst.msk [vmem:[#allocation2 + $0xb0] sm:$0xff] %vm1760, %v1709
      %1784 = vst.msk [vmem:[#allocation2 + $0xb8] sm:$0xff] %vm1760, %v1711
      %1785 = vst.msk [vmem:[#allocation2 + $0xc0] sm:$0xff] %vm1760, %v1713
      %1786 = vst.msk [vmem:[#allocation2 + $0xc8] sm:$0xff] %vm1760, %v1715
      %1787 = vst.msk [vmem:[#allocation2 + $0xd0] sm:$0xff] %vm1760, %v1717
      %1788 = vst.msk [vmem:[#allocation2 + $0xd8] sm:$0xff] %vm1760, %v1719
      %1789 = vst.msk [vmem:[#allocation2 + $0xe0] sm:$0xff] %vm1760, %v1721
      %1790 = vst.msk [vmem:[#allocation2 + $0xe8] sm:$0xff] %vm1760, %v1723
      %1791 = vst.msk [vmem:[#allocation2 + $0xf0] sm:$0xff] %vm1760, %v1725
      %1792 = vst.msk [vmem:[#allocation2 + $0xf8] sm:$0xff] %vm1760, %v1727
      %v1793 = vld [vmem:[#allocation2] sm:$0xff]
      %v1794 = vld [vmem:[#allocation2 + $0x8] sm:$0xff]
      %v1795 = vld [vmem:[#allocation2 + $0x10] sm:$0xff]
      %v1796 = vld [vmem:[#allocation2 + $0x18] sm:$0xff]
      %v1797 = vld [vmem:[#allocation2 + $0x20] sm:$0xff]
      %v1798 = vld [vmem:[#allocation2 + $0x28] sm:$0xff]
      %v1799 = vld [vmem:[#allocation2 + $0x30] sm:$0xff]
      %v1800 = vld [vmem:[#allocation2 + $0x38] sm:$0xff]
      %v1801 = vld [vmem:[#allocation2 + $0x40] sm:$0xff]
      %v1802 = vld [vmem:[#allocation2 + $0x48] sm:$0xff]
      %v1803 = vld [vmem:[#allocation2 + $0x50] sm:$0xff]
      %v1804 = vld [vmem:[#allocation2 + $0x58] sm:$0xff]
      %v1805 = vld [vmem:[#allocation2 + $0x60] sm:$0xff]
      %v1806 = vld [vmem:[#allocation2 + $0x68] sm:$0xff]
      %v1807 = vld [vmem:[#allocation2 + $0x70] sm:$0xff]
      %v1808 = vld [vmem:[#allocation2 + $0x78] sm:$0xff]
      %v1809 = vld [vmem:[#allocation2 + $0x80] sm:$0xff]
      %v1810 = vld [vmem:[#allocation2 + $0x88] sm:$0xff]
      %v1811 = vld [vmem:[#allocation2 + $0x90] sm:$0xff]
      %v1812 = vld [vmem:[#allocation2 + $0x98] sm:$0xff]
      %v1813 = vld [vmem:[#allocation2 + $0xa0] sm:$0xff]
      %v1814 = vld [vmem:[#allocation2 + $0xa8] sm:$0xff]
      %v1815 = vld [vmem:[#allocation2 + $0xb0] sm:$0xff]
      %v1816 = vld [vmem:[#allocation2 + $0xb8] sm:$0xff]
      %v1817 = vld [vmem:[#allocation2 + $0xc0] sm:$0xff]
      %v1818 = vld [vmem:[#allocation2 + $0xc8] sm:$0xff]
      %v1819 = vld [vmem:[#allocation2 + $0xd0] sm:$0xff]
      %v1820 = vld [vmem:[#allocation2 + $0xd8] sm:$0xff]
      %v1821 = vld [vmem:[#allocation2 + $0xe0] sm:$0xff]
      %v1822 = vld [vmem:[#allocation2 + $0xe8] sm:$0xff]
      %v1823 = vld [vmem:[#allocation2 + $0xf0] sm:$0xff]
      %v1824 = vld [vmem:[#allocation2 + $0xf8] sm:$0xff]
      %v1825 = vld [vmem:[%s1] sm:$0xff]
      %v1826 = vld [vmem:[%s1 + $0x8] sm:$0xff]
      %v1827 = vld [vmem:[%s1 + $0x10] sm:$0xff]
      %v1828 = vld [vmem:[%s1 + $0x18] sm:$0xff]
      %v1829 = vld [vmem:[%s1 + $0x20] sm:$0xf]
      %vm1830 = vcmask 293888
      %v1832 = vsel %vm1830, %v1793, 0
      %v1835 = vsel %vm1830, %v1794, 0
      %v1838 = vsel %vm1830, %v1795, 0
      %v1841 = vsel %vm1830, %v1796, 0
      %v1844 = vsel %vm1830, %v1797, 0
      %v1847 = vsel %vm1830, %v1798, 0
      %v1850 = vsel %vm1830, %v1799, 0
      %v1853 = vsel %vm1830, %v1800, 0
      %v1856 = vsel %vm1830, %v1801, 0
      %v1859 = vsel %vm1830, %v1802, 0
      %v1862 = vsel %vm1830, %v1803, 0
      %v1865 = vsel %vm1830, %v1804, 0
      %v1868 = vsel %vm1830, %v1805, 0
      %v1871 = vsel %vm1830, %v1806, 0
      %v1874 = vsel %vm1830, %v1807, 0
      %v1877 = vsel %vm1830, %v1808, 0
      %v1880 = vsel %vm1830, %v1809, 0
      %v1883 = vsel %vm1830, %v1810, 0
      %v1886 = vsel %vm1830, %v1811, 0
      %v1889 = vsel %vm1830, %v1812, 0
      %v1892 = vsel %vm1830, %v1813, 0
      %v1895 = vsel %vm1830, %v1814, 0
      %v1898 = vsel %vm1830, %v1815, 0
      %v1901 = vsel %vm1830, %v1816, 0
      %v1904 = vsel %vm1830, %v1817, 0
      %v1907 = vsel %vm1830, %v1818, 0
      %v1910 = vsel %vm1830, %v1819, 0
      %v1913 = vsel %vm1830, %v1820, 0
      %v1916 = vsel %vm1830, %v1821, 0
      %v1919 = vsel %vm1830, %v1822, 0
      %v1922 = vsel %vm1830, %v1823, 0
      %v1925 = vsel %vm1830, %v1824, 0
      %vm1927 = vcmask 1043456
      %v1929 = vsel %vm1927, %v1829, 0
      %1931 = vmatprep.subr.mxu0 0.0
      %1932 = vmatpush1.msra.mxu0 %v1825
      %1933 = vmatprep.subr.mxu0 0.0
      %1934 = vmatpush1.msra.mxu0 %v1826
      %1935 = vmatprep.subr.mxu0 0.0
      %1936 = vmatpush1.msra.mxu0 %v1827
      %1937 = vmatprep.subr.mxu0 0.0
      %1938 = vmatpush1.msra.mxu0 %v1828
      %1939 = vmatprep.subr.mxu0 0.0
      %1940 = vmatpush1.msra.mxu0 %v1929
      %1941 = vmatprep.subr.mxu0 0.0
      %1942 = vmatpush1.msra.mxu0 0.0
      %1943 = vmatprep.subr.mxu0 0.0
      %1944 = vmatpush1.msra.mxu0 0.0
      %1945 = vmatprep.subr.mxu0 0.0
      %1946 = vmatpush1.msra.mxu0 0.0
      %1947 = vmatprep.subr.mxu0 0.0
      %1948 = vmatpush1.msra.mxu0 0.0
      %1949 = vmatprep.subr.mxu0 0.0
      %1950 = vmatpush1.msra.mxu0 0.0
      %1951 = vmatprep.subr.mxu0 0.0
      %1952 = vmatpush1.msra.mxu0 0.0
      %1953 = vmatprep.subr.mxu0 0.0
      %1954 = vmatpush1.msra.mxu0 0.0
      %1955 = vmatprep.subr.mxu0 0.0
      %1956 = vmatpush1.msra.mxu0 0.0
      %1957 = vmatprep.subr.mxu0 0.0
      %1958 = vmatpush1.msra.mxu0 0.0
      %1959 = vmatprep.subr.mxu0 0.0
      %1960 = vmatpush1.msra.mxu0 0.0
      %1961 = vmatprep.subr.mxu0 0.0
      %1962 = vmatpush1.msra.mxu0 0.0
      %1963 = vmatprep.subr.mxu0 0.0
      %1964 = vmatpush1.msra.mxu0 0.0
      %1965 = vmatprep.subr.mxu0 0.0
      %1966 = vmatpush1.msra.mxu0 0.0
      %1967 = vmatprep.subr.mxu0 0.0
      %1968 = vmatpush1.msra.mxu0 0.0
      %1969 = vmatprep.subr.mxu0 0.0
      %1970 = vmatpush1.msra.mxu0 0.0
      %1971 = vmatprep.subr.mxu0 0.0
      %1972 = vmatpush1.msra.mxu0 0.0
      %1973 = vmatprep.subr.mxu0 0.0
      %1974 = vmatpush1.msra.mxu0 0.0
      %1975 = vmatprep.subr.mxu0 0.0
      %1976 = vmatpush1.msra.mxu0 0.0
      %1977 = vmatprep.subr.mxu0 0.0
      %1978 = vmatpush1.msra.mxu0 0.0
      %1979 = vmatprep.subr.mxu0 0.0
      %1980 = vmatpush1.msra.mxu0 0.0
      %1981 = vmatprep.subr.mxu0 0.0
      %1982 = vmatpush1.msra.mxu0 0.0
      %1983 = vmatprep.subr.mxu0 0.0
      %1984 = vmatpush1.msra.mxu0 0.0
      %1985 = vmatprep.subr.mxu0 0.0
      %1986 = vmatpush1.msra.mxu0 0.0
      %1987 = vmatprep.subr.mxu0 0.0
      %1988 = vmatpush1.msra.mxu0 0.0
      %1989 = vmatprep.subr.mxu0 0.0
      %1990 = vmatpush1.msra.mxu0 0.0
      %1991 = vmatprep.subr.mxu0 0.0
      %1992 = vmatpush1.msra.mxu0 0.0
      %1993 = vmatprep.subr.mxu0 0.0
      %1994 = vmatpush1.msra.mxu0 0.0
      %1995 = vmatprep.mubr.f32.mxu0 0.0
      %1996 = vmatmul.mubr.f32.gmra.mrb[0].mxu0 %v1832
      %v1997 = vpop.f32.mrb[0].mxu0
      %v1998 = vadd.f32 0.0, %v1997
      %v1999 = vpop.f32.mrb[0].mxu0
      %2000 = vmatprep.mubr.f32.mxu0 0.0
      %2001 = vmatmul.mubr.f32.gmra.mrb[0].mxu0 %v1835
      %v2002 = vpop.f32.mrb[0].mxu0
      %v2003 = vadd.f32 0.0, %v2002
      %v2004 = vpop.f32.mrb[0].mxu0
      %2005 = vmatprep.mubr.f32.mxu0 0.0
      %2006 = vmatmul.mubr.f32.gmra.mrb[0].mxu0 %v1838
      %v2007 = vpop.f32.mrb[0].mxu0
      %v2008 = vadd.f32 0.0, %v2007
      %v2009 = vpop.f32.mrb[0].mxu0
      %2010 = vmatprep.mubr.f32.mxu0 0.0
      %2011 = vmatmul.mubr.f32.gmra.mrb[0].mxu0 %v1841
      %v2012 = vpop.f32.mrb[0].mxu0
      %v2013 = vadd.f32 0.0, %v2012
      %v2014 = vpop.f32.mrb[0].mxu0
      %2015 = vmatprep.mubr.f32.mxu0 0.0
      %2016 = vmatmul.mubr.f32.gmra.mrb[0].mxu0 %v1844
      %v2017 = vpop.f32.mrb[0].mxu0
      %v2018 = vadd.f32 0.0, %v2017
      %v2019 = vpop.f32.mrb[0].mxu0
      %2020 = vmatprep.mubr.f32.mxu0 0.0
      %2021 = vmatmul.mubr.f32.gmra.mrb[0].mxu0 %v1847
      %v2022 = vpop.f32.mrb[0].mxu0
      %v2023 = vadd.f32 0.0, %v2022
      %v2024 = vpop.f32.mrb[0].mxu0
      %2025 = vmatprep.mubr.f32.mxu0 0.0
      %2026 = vmatmul.mubr.f32.gmra.mrb[0].mxu0 %v1850
      %v2027 = vpop.f32.mrb[0].mxu0
      %v2028 = vadd.f32 0.0, %v2027
      %v2029 = vpop.f32.mrb[0].mxu0
      %2030 = vmatprep.mubr.f32.mxu0 0.0
      %2031 = vmatmul.mubr.f32.gmra.mrb[0].mxu0 %v1853
      %v2032 = vpop.f32.mrb[0].mxu0
      %v2033 = vadd.f32 0.0, %v2032
      %v2034 = vpop.f32.mrb[0].mxu0
      %2035 = vmatprep.mubr.f32.mxu0 0.0
      %2036 = vmatmul.mubr.f32.gmra.mrb[0].mxu0 %v1856
      %v2037 = vpop.f32.mrb[0].mxu0
      %v2038 = vadd.f32 0.0, %v2037
      %v2039 = vpop.f32.mrb[0].mxu0
      %2040 = vmatprep.mubr.f32.mxu0 0.0
      %2041 = vmatmul.mubr.f32.gmra.mrb[0].mxu0 %v1859
      %v2042 = vpop.f32.mrb[0].mxu0
      %v2043 = vadd.f32 0.0, %v2042
      %v2044 = vpop.f32.mrb[0].mxu0
      %2045 = vmatprep.mubr.f32.mxu0 0.0
      %2046 = vmatmul.mubr.f32.gmra.mrb[0].mxu0 %v1862
      %v2047 = vpop.f32.mrb[0].mxu0
      %v2048 = vadd.f32 0.0, %v2047
      %v2049 = vpop.f32.mrb[0].mxu0
      %2050 = vmatprep.mubr.f32.mxu0 0.0
      %2051 = vmatmul.mubr.f32.gmra.mrb[0].mxu0 %v1865
      %v2052 = vpop.f32.mrb[0].mxu0
      %v2053 = vadd.f32 0.0, %v2052
      %v2054 = vpop.f32.mrb[0].mxu0
      %2055 = vmatprep.mubr.f32.mxu0 0.0
      %2056 = vmatmul.mubr.f32.gmra.mrb[0].mxu0 %v1868
      %v2057 = vpop.f32.mrb[0].mxu0
      %v2058 = vadd.f32 0.0, %v2057
      %v2059 = vpop.f32.mrb[0].mxu0
      %2060 = vmatprep.mubr.f32.mxu0 0.0
      %2061 = vmatmul.mubr.f32.gmra.mrb[0].mxu0 %v1871
      %v2062 = vpop.f32.mrb[0].mxu0
      %v2063 = vadd.f32 0.0, %v2062
      %v2064 = vpop.f32.mrb[0].mxu0
      %2065 = vmatprep.mubr.f32.mxu0 0.0
      %2066 = vmatmul.mubr.f32.gmra.mrb[0].mxu0 %v1874
      %v2067 = vpop.f32.mrb[0].mxu0
      %v2068 = vadd.f32 0.0, %v2067
      %v2069 = vpop.f32.mrb[0].mxu0
      %2070 = vmatprep.mubr.f32.mxu0 0.0
      %2071 = vmatmul.mubr.f32.gmra.mrb[0].mxu0 %v1877
      %v2072 = vpop.f32.mrb[0].mxu0
      %v2073 = vadd.f32 0.0, %v2072
      %v2074 = vpop.f32.mrb[0].mxu0
      %2075 = vmatprep.mubr.f32.mxu0 0.0
      %2076 = vmatmul.mubr.f32.gmra.mrb[0].mxu0 %v1880
      %v2077 = vpop.f32.mrb[0].mxu0
      %v2078 = vadd.f32 0.0, %v2077
      %v2079 = vpop.f32.mrb[0].mxu0
      %2080 = vmatprep.mubr.f32.mxu0 0.0
      %2081 = vmatmul.mubr.f32.gmra.mrb[0].mxu0 %v1883
      %v2082 = vpop.f32.mrb[0].mxu0
      %v2083 = vadd.f32 0.0, %v2082
      %v2084 = vpop.f32.mrb[0].mxu0
      %2085 = vmatprep.mubr.f32.mxu0 0.0
      %2086 = vmatmul.mubr.f32.gmra.mrb[0].mxu0 %v1886
      %v2087 = vpop.f32.mrb[0].mxu0
      %v2088 = vadd.f32 0.0, %v2087
      %v2089 = vpop.f32.mrb[0].mxu0
      %2090 = vmatprep.mubr.f32.mxu0 0.0
      %2091 = vmatmul.mubr.f32.gmra.mrb[0].mxu0 %v1889
      %v2092 = vpop.f32.mrb[0].mxu0
      %v2093 = vadd.f32 0.0, %v2092
      %v2094 = vpop.f32.mrb[0].mxu0
      %2095 = vmatprep.mubr.f32.mxu0 0.0
      %2096 = vmatmul.mubr.f32.gmra.mrb[0].mxu0 %v1892
      %v2097 = vpop.f32.mrb[0].mxu0
      %v2098 = vadd.f32 0.0, %v2097
      %v2099 = vpop.f32.mrb[0].mxu0
      %2100 = vmatprep.mubr.f32.mxu0 0.0
      %2101 = vmatmul.mubr.f32.gmra.mrb[0].mxu0 %v1895
      %v2102 = vpop.f32.mrb[0].mxu0
      %v2103 = vadd.f32 0.0, %v2102
      %v2104 = vpop.f32.mrb[0].mxu0
      %2105 = vmatprep.mubr.f32.mxu0 0.0
      %2106 = vmatmul.mubr.f32.gmra.mrb[0].mxu0 %v1898
      %v2107 = vpop.f32.mrb[0].mxu0
      %v2108 = vadd.f32 0.0, %v2107
      %v2109 = vpop.f32.mrb[0].mxu0
      %2110 = vmatprep.mubr.f32.mxu0 0.0
      %2111 = vmatmul.mubr.f32.gmra.mrb[0].mxu0 %v1901
      %v2112 = vpop.f32.mrb[0].mxu0
      %v2113 = vadd.f32 0.0, %v2112
      %v2114 = vpop.f32.mrb[0].mxu0
      %2115 = vmatprep.mubr.f32.mxu0 0.0
      %2116 = vmatmul.mubr.f32.gmra.mrb[0].mxu0 %v1904
      %v2117 = vpop.f32.mrb[0].mxu0
      %v2118 = vadd.f32 0.0, %v2117
      %v2119 = vpop.f32.mrb[0].mxu0
      %2120 = vmatprep.mubr.f32.mxu0 0.0
      %2121 = vmatmul.mubr.f32.gmra.mrb[0].mxu0 %v1907
      %v2122 = vpop.f32.mrb[0].mxu0
      %v2123 = vadd.f32 0.0, %v2122
      %v2124 = vpop.f32.mrb[0].mxu0
      %2125 = vmatprep.mubr.f32.mxu0 0.0
      %2126 = vmatmul.mubr.f32.gmra.mrb[0].mxu0 %v1910
      %v2127 = vpop.f32.mrb[0].mxu0
      %v2128 = vadd.f32 0.0, %v2127
      %v2129 = vpop.f32.mrb[0].mxu0
      %2130 = vmatprep.mubr.f32.mxu0 0.0
      %2131 = vmatmul.mubr.f32.gmra.mrb[0].mxu0 %v1913
      %v2132 = vpop.f32.mrb[0].mxu0
      %v2133 = vadd.f32 0.0, %v2132
      %v2134 = vpop.f32.mrb[0].mxu0
      %2135 = vmatprep.mubr.f32.mxu0 0.0
      %2136 = vmatmul.mubr.f32.gmra.mrb[0].mxu0 %v1916
      %v2137 = vpop.f32.mrb[0].mxu0
      %v2138 = vadd.f32 0.0, %v2137
      %v2139 = vpop.f32.mrb[0].mxu0
      %2140 = vmatprep.mubr.f32.mxu0 0.0
      %2141 = vmatmul.mubr.f32.gmra.mrb[0].mxu0 %v1919
      %v2142 = vpop.f32.mrb[0].mxu0
      %v2143 = vadd.f32 0.0, %v2142
      %v2144 = vpop.f32.mrb[0].mxu0
      %2145 = vmatprep.mubr.f32.mxu0 0.0
      %2146 = vmatmul.mubr.f32.gmra.mrb[0].mxu0 %v1922
      %v2147 = vpop.f32.mrb[0].mxu0
      %v2148 = vadd.f32 0.0, %v2147
      %v2149 = vpop.f32.mrb[0].mxu0
      %2150 = vmatprep.mubr.f32.mxu0 0.0
      %2151 = vmatmul.mubr.f32.gmra.mrb[0].mxu0 %v1925
      %v2152 = vpop.f32.mrb[0].mxu0
      %v2153 = vadd.f32 0.0, %v2152
      %v2154 = vpop.f32.mrb[0].mxu0
      %2155 = vdwg.mxu0
      %vm2156 = vcmask 64512
      %v2157 = vsel %vm2156, %v1998, 0.0
      %v2158 = vsel %vm2156, %v2003, 0.0
      %v2159 = vadd.f32 %v2157, %v2158
      %v2160 = vsel %vm2156, %v2008, 0.0
      %v2161 = vadd.f32 %v2159, %v2160
      %v2162 = vsel %vm2156, %v2013, 0.0
      %v2163 = vadd.f32 %v2161, %v2162
      %v2164 = vsel %vm2156, %v2018, 0.0
      %v2165 = vadd.f32 %v2163, %v2164
      %v2166 = vsel %vm2156, %v2023, 0.0
      %v2167 = vadd.f32 %v2165, %v2166
      %v2168 = vsel %vm2156, %v2028, 0.0
      %v2169 = vadd.f32 %v2167, %v2168
      %v2170 = vsel %vm2156, %v2033, 0.0
      %v2171 = vadd.f32 %v2169, %v2170
      %v2172 = vsel %vm2156, %v2038, 0.0
      %v2173 = vadd.f32 %v2171, %v2172
      %v2174 = vsel %vm2156, %v2043, 0.0
      %v2175 = vadd.f32 %v2173, %v2174
      %v2176 = vsel %vm2156, %v2048, 0.0
      %v2177 = vadd.f32 %v2175, %v2176
      %v2178 = vsel %vm2156, %v2053, 0.0
      %v2179 = vadd.f32 %v2177, %v2178
      %v2180 = vsel %vm2156, %v2058, 0.0
      %v2181 = vadd.f32 %v2179, %v2180
      %v2182 = vsel %vm2156, %v2063, 0.0
      %v2183 = vadd.f32 %v2181, %v2182
      %v2184 = vsel %vm2156, %v2068, 0.0
      %v2185 = vadd.f32 %v2183, %v2184
      %v2186 = vsel %vm2156, %v2073, 0.0
      %v2187 = vadd.f32 %v2185, %v2186
      %v2188 = vsel %vm2156, %v2078, 0.0
      %v2189 = vadd.f32 %v2187, %v2188
      %v2190 = vsel %vm2156, %v2083, 0.0
      %v2191 = vadd.f32 %v2189, %v2190
      %v2192 = vsel %vm2156, %v2088, 0.0
      %v2193 = vadd.f32 %v2191, %v2192
      %v2194 = vsel %vm2156, %v2093, 0.0
      %v2195 = vadd.f32 %v2193, %v2194
      %v2196 = vsel %vm2156, %v2098, 0.0
      %v2197 = vadd.f32 %v2195, %v2196
      %v2198 = vsel %vm2156, %v2103, 0.0
      %v2199 = vadd.f32 %v2197, %v2198
      %v2200 = vsel %vm2156, %v2108, 0.0
      %v2201 = vadd.f32 %v2199, %v2200
      %v2202 = vsel %vm2156, %v2113, 0.0
      %v2203 = vadd.f32 %v2201, %v2202
      %v2204 = vsel %vm2156, %v2118, 0.0
      %v2205 = vadd.f32 %v2203, %v2204
      %v2206 = vsel %vm2156, %v2123, 0.0
      %v2207 = vadd.f32 %v2205, %v2206
      %v2208 = vsel %vm2156, %v2128, 0.0
      %v2209 = vadd.f32 %v2207, %v2208
      %v2210 = vsel %vm2156, %v2133, 0.0
      %v2211 = vadd.f32 %v2209, %v2210
      %v2212 = vsel %vm2156, %v2138, 0.0
      %v2213 = vadd.f32 %v2211, %v2212
      %v2214 = vsel %vm2156, %v2143, 0.0
      %v2215 = vadd.f32 %v2213, %v2214
      %v2216 = vsel %vm2156, %v2148, 0.0
      %v2217 = vadd.f32 %v2215, %v2216
      %v2218 = vsel %vm2156, %v2153, 0.0
      %v2219 = vadd.f32 %v2217, %v2218
      %v2220 = vrot.slane %v2219, 4
      %v2221 = vadd.f32 %v2219, %v2220
      %v2222 = vrot.slane %v2221, 2
      %v2223 = vadd.f32 %v2221, %v2222
      %v2224 = vrot.slane %v2223, 1
      %v2225 = vadd.f32 %v2223, %v2224
      %vm2226 = vcmask 57344
      %2227 = vst.msk [vmem:[%s181] sm:$0x1] %vm2226, %v2225
      %v2228 = vmul.f32 %v1998, %v1998
      %v2229 = vmul.f32 %v2003, %v2003
      %v2230 = vmul.f32 %v2008, %v2008
      %v2231 = vmul.f32 %v2013, %v2013
      %v2232 = vmul.f32 %v2018, %v2018
      %v2233 = vmul.f32 %v2023, %v2023
      %v2234 = vmul.f32 %v2028, %v2028
      %v2235 = vmul.f32 %v2033, %v2033
      %v2236 = vmul.f32 %v2038, %v2038
      %v2237 = vmul.f32 %v2043, %v2043
      %v2238 = vmul.f32 %v2048, %v2048
      %v2239 = vmul.f32 %v2053, %v2053
      %v2240 = vmul.f32 %v2058, %v2058
      %v2241 = vmul.f32 %v2063, %v2063
      %v2242 = vmul.f32 %v2068, %v2068
      %v2243 = vmul.f32 %v2073, %v2073
      %v2244 = vmul.f32 %v2078, %v2078
      %v2245 = vmul.f32 %v2083, %v2083
      %v2246 = vmul.f32 %v2088, %v2088
      %v2247 = vmul.f32 %v2093, %v2093
      %v2248 = vmul.f32 %v2098, %v2098
      %v2249 = vmul.f32 %v2103, %v2103
      %v2250 = vmul.f32 %v2108, %v2108
      %v2251 = vmul.f32 %v2113, %v2113
      %v2252 = vmul.f32 %v2118, %v2118
      %v2253 = vmul.f32 %v2123, %v2123
      %v2254 = vmul.f32 %v2128, %v2128
      %v2255 = vmul.f32 %v2133, %v2133
      %v2256 = vmul.f32 %v2138, %v2138
      %v2257 = vmul.f32 %v2143, %v2143
      %v2258 = vmul.f32 %v2148, %v2148
      %v2259 = vmul.f32 %v2153, %v2153
      %v2260 = vsel %vm2156, %v2228, 0.0
      %v2261 = vsel %vm2156, %v2229, 0.0
      %v2262 = vadd.f32 %v2260, %v2261
      %v2263 = vsel %vm2156, %v2230, 0.0
      %v2264 = vadd.f32 %v2262, %v2263
      %v2265 = vsel %vm2156, %v2231, 0.0
      %v2266 = vadd.f32 %v2264, %v2265
      %v2267 = vsel %vm2156, %v2232, 0.0
      %v2268 = vadd.f32 %v2266, %v2267
      %v2269 = vsel %vm2156, %v2233, 0.0
      %v2270 = vadd.f32 %v2268, %v2269
      %v2271 = vsel %vm2156, %v2234, 0.0
      %v2272 = vadd.f32 %v2270, %v2271
      %v2273 = vsel %vm2156, %v2235, 0.0
      %v2274 = vadd.f32 %v2272, %v2273
      %v2275 = vsel %vm2156, %v2236, 0.0
      %v2276 = vadd.f32 %v2274, %v2275
      %v2277 = vsel %vm2156, %v2237, 0.0
      %v2278 = vadd.f32 %v2276, %v2277
      %v2279 = vsel %vm2156, %v2238, 0.0
      %v2280 = vadd.f32 %v2278, %v2279
      %v2281 = vsel %vm2156, %v2239, 0.0
      %v2282 = vadd.f32 %v2280, %v2281
      %v2283 = vsel %vm2156, %v2240, 0.0
      %v2284 = vadd.f32 %v2282, %v2283
      %v2285 = vsel %vm2156, %v2241, 0.0
      %v2286 = vadd.f32 %v2284, %v2285
      %v2287 = vsel %vm2156, %v2242, 0.0
      %v2288 = vadd.f32 %v2286, %v2287
      %v2289 = vsel %vm2156, %v2243, 0.0
      %v2290 = vadd.f32 %v2288, %v2289
      %v2291 = vsel %vm2156, %v2244, 0.0
      %v2292 = vadd.f32 %v2290, %v2291
      %v2293 = vsel %vm2156, %v2245, 0.0
      %v2294 = vadd.f32 %v2292, %v2293
      %v2295 = vsel %vm2156, %v2246, 0.0
      %v2296 = vadd.f32 %v2294, %v2295
      %v2297 = vsel %vm2156, %v2247, 0.0
      %v2298 = vadd.f32 %v2296, %v2297
      %v2299 = vsel %vm2156, %v2248, 0.0
      %v2300 = vadd.f32 %v2298, %v2299
      %v2301 = vsel %vm2156, %v2249, 0.0
      %v2302 = vadd.f32 %v2300, %v2301
      %v2303 = vsel %vm2156, %v2250, 0.0
      %v2304 = vadd.f32 %v2302, %v2303
      %v2305 = vsel %vm2156, %v2251, 0.0
      %v2306 = vadd.f32 %v2304, %v2305
      %v2307 = vsel %vm2156, %v2252, 0.0
      %v2308 = vadd.f32 %v2306, %v2307
      %v2309 = vsel %vm2156, %v2253, 0.0
      %v2310 = vadd.f32 %v2308, %v2309
      %v2311 = vsel %vm2156, %v2254, 0.0
      %v2312 = vadd.f32 %v2310, %v2311
      %v2313 = vsel %vm2156, %v2255, 0.0
      %v2314 = vadd.f32 %v2312, %v2313
      %v2315 = vsel %vm2156, %v2256, 0.0
      %v2316 = vadd.f32 %v2314, %v2315
      %v2317 = vsel %vm2156, %v2257, 0.0
      %v2318 = vadd.f32 %v2316, %v2317
      %v2319 = vsel %vm2156, %v2258, 0.0
      %v2320 = vadd.f32 %v2318, %v2319
      %v2321 = vsel %vm2156, %v2259, 0.0
      %v2322 = vadd.f32 %v2320, %v2321
      %v2323 = vrot.slane %v2322, 4
      %v2324 = vadd.f32 %v2322, %v2323
      %v2325 = vrot.slane %v2324, 2
      %v2326 = vadd.f32 %v2324, %v2325
      %v2327 = vrot.slane %v2326, 1
      %v2328 = vadd.f32 %v2326, %v2327
      %2329 = vst.msk [vmem:[%s181 + $0x1] sm:$0x1] %vm2226, %v2328
      %2330 = vxpose.xlu0.b32.start [1/16] %v1998, 128
      %2331 = vxpose.xlu0.b32.cont [2/16] %v2003, 128
      %2332 = vxpose.xlu0.b32.cont [3/16] %v2008, 128
      %2333 = vxpose.xlu0.b32.cont [4/16] %v2013, 128
      %2334 = vxpose.xlu0.b32.cont [5/16] %v2018, 128
      %2335 = vxpose.xlu0.b32.cont [6/16] %v2023, 128
      %2336 = vxpose.xlu0.b32.cont [7/16] %v2028, 128
      %2337 = vxpose.xlu0.b32.cont [8/16] %v2033, 128
      %2338 = vxpose.xlu0.b32.cont [9/16] %v2038, 128
      %2339 = vxpose.xlu0.b32.cont [10/16] %v2043, 128
      %2340 = vxpose.xlu0.b32.cont [11/16] %v2048, 128
      %2341 = vxpose.xlu0.b32.cont [12/16] %v2053, 128
      %2342 = vxpose.xlu0.b32.cont [13/16] %v2058, 128
      %2343 = vxpose.xlu0.b32.cont [14/16] %v2063, 128
      %2344 = vxpose.xlu0.b32.cont [15/16] %v2068, 128
      %2345 = vxpose.xlu0.b32.end [16/16] %v2073, 128
      %v2346 = vpop.trf.xlu0
      %v2347 = vpop.trf.xlu0
      %v2348 = vpop.trf.xlu0
      %v2349 = vpop.trf.xlu0
      %v2350 = vpop.trf.xlu0
      %v2351 = vpop.trf.xlu0
      %v2352 = vpop.trf.xlu0
      %v2353 = vpop.trf.xlu0
      %v2354 = vpop.trf.xlu0
      %v2355 = vpop.trf.xlu0
      %v2356 = vpop.trf.xlu0
      %v2357 = vpop.trf.xlu0
      %v2358 = vpop.trf.xlu0
      %v2359 = vpop.trf.xlu0
      %v2360 = vpop.trf.xlu0
      %v2361 = vpop.trf.xlu0
      %2362 = vxpose.xlu0.b32.start [1/16] %v2078, 128
      %2363 = vxpose.xlu0.b32.cont [2/16] %v2083, 128
      %2364 = vxpose.xlu0.b32.cont [3/16] %v2088, 128
      %2365 = vxpose.xlu0.b32.cont [4/16] %v2093, 128
      %2366 = vxpose.xlu0.b32.cont [5/16] %v2098, 128
      %2367 = vxpose.xlu0.b32.cont [6/16] %v2103, 128
      %2368 = vxpose.xlu0.b32.cont [7/16] %v2108, 128
      %2369 = vxpose.xlu0.b32.cont [8/16] %v2113, 128
      %2370 = vxpose.xlu0.b32.cont [9/16] %v2118, 128
      %2371 = vxpose.xlu0.b32.cont [10/16] %v2123, 128
      %2372 = vxpose.xlu0.b32.cont [11/16] %v2128, 128
      %2373 = vxpose.xlu0.b32.cont [12/16] %v2133, 128
      %2374 = vxpose.xlu0.b32.cont [13/16] %v2138, 128
      %2375 = vxpose.xlu0.b32.cont [14/16] %v2143, 128
      %2376 = vxpose.xlu0.b32.cont [15/16] %v2148, 128
      %2377 = vxpose.xlu0.b32.end [16/16] %v2153, 128
      %v2378 = vpop.trf.xlu0
      %v2379 = vpop.trf.xlu0
      %v2380 = vpop.trf.xlu0
      %v2381 = vpop.trf.xlu0
      %v2382 = vpop.trf.xlu0
      %v2383 = vpop.trf.xlu0
      %v2384 = vpop.trf.xlu0
      %v2385 = vpop.trf.xlu0
      %v2386 = vpop.trf.xlu0
      %v2387 = vpop.trf.xlu0
      %v2388 = vpop.trf.xlu0
      %v2389 = vpop.trf.xlu0
      %v2390 = vpop.trf.xlu0
      %v2391 = vpop.trf.xlu0
      %v2392 = vpop.trf.xlu0
      %v2393 = vpop.trf.xlu0
      %2394 = vst [vmem:[%s177] sm:$0xff] %v2346
      %2395 = vst [vmem:[%s177 + $0x8] sm:$0xff] %v2378
      %p2396 = scmp.lt.s32.totalorder %s15, 1
      %s2397 = scalar_select %p2396, %s15, 1
      %s2398 = smul.addr %s2397, 2
      %s2399 = smul.addr %s2398, 8
      %s2400 = scalar_lea.vmem %s2, %s2399
      %p2401 = scmp.lt.s32.totalorder %s15, 1
      %s2402 = scalar_select %p2401, %s15, 1
      %s2403 = smul.addr %s2402, 2
      %s2404 = scalar_lea.vmem %s3, %s2403
      // Predicated region
      $region29: #{conv_bn.2} parent=27 // pred_check
        %p2405 = pneg %p80
      $region30: #{conv_bn.2} parent=27 // pred_check_branch
        %2407 = sbr.rel (%p2405) target = $region32
      $region31: #{conv_bn.2} parent=27 // pred_region
        _
      $region32: #{conv_bn.2} parent=27 // pred_fallthru
        _
      // Predicated region
      $region33: #{conv_bn.2} parent=27 // pred_check
        %p2408 = pneg %p106
      $region34: #{conv_bn.2} parent=27 // pred_check_branch
        %2410 = sbr.rel (%p2408) target = $region36
      $region35: #{conv_bn.2} parent=27 // pred_region
        _
      $region36: #{conv_bn.2} parent=27 // pred_fallthru
        _
    $region28: #{conv_bn.2} parent=5 // pred_fallthru
      _
    %p2411 = scmp.le.s32.totalorder 2, %s10
    // Predicated region
    $region37: #{conv_bn.2} parent=5 // pred_check
      %p2412 = pneg %p2411
    $region38: #{conv_bn.2} parent=5 // pred_check_branch
      %2414 = sbr.rel (%p2412) target = $region40
    $region39: #{conv_bn.2} parent=5 // pred_region
      %s2415 = ssub.s32 %s10, 2
      // Predicated region
      $region41: #{conv_bn.2} parent=39 // pred_check
        %p2416 = pneg %p86
      $region42: #{conv_bn.2} parent=39 // pred_check_branch
        %2418 = sbr.rel (%p2416) target = $region44
      $region43: #{conv_bn.2} parent=39 // pred_region
        %p2419 = scmp.lt.s32.totalorder %s16, 1
        %s2420 = scalar_select %p2419, %s16, 1
        %s2421 = smul.addr %s2420, 2
        %s2422 = smul.addr %s2421, 8
        %s2423 = scalar_lea.vmem %s2, %s2422
      $region44: #{conv_bn.2} parent=39 // pred_fallthru
        _
      // Predicated region
      $region45: #{conv_bn.2} parent=39 // pred_check
        %p2424 = pneg %p112
      $region46: #{conv_bn.2} parent=39 // pred_check_branch
        %2426 = sbr.rel (%p2424) target = $region48
      $region47: #{conv_bn.2} parent=39 // pred_region
        %p2427 = scmp.lt.s32.totalorder %s16, 1
        %s2428 = scalar_select %p2427, %s16, 1
        %s2429 = smul.addr %s2428, 2
        %s2430 = scalar_lea.vmem %s3, %s2429
      $region48: #{conv_bn.2} parent=39 // pred_fallthru
        _
    $region40: #{conv_bn.2} parent=5 // pred_fallthru
      _
  $region6: #{conv_bn.2} parent=0 // loop_footer
    %s14 = sadd.s32 1, %s10
  $region7: #{conv_bn.2} parent=0 // loop_footer_branch
    %9 = sbr.rel target = $region3
  $region8: #{conv_bn.2} parent=0 // loop_exit
    _

</llo_original>
